<compile_context>
chip_gen: v5e
topology: v5e:2x2
jax: 0.10.0
libtpu: 0.0.40
codegen_flags: <defaults>
</compile_context>

<pallas_src>
import jax
import jax.numpy as jnp
from jax.experimental import pallas as pl
from jax.experimental.pallas import tpu as pltpu


_LANE = 128       # lane width / output padding unit
_SUB = 8          # sublane unit for batch tiling


def _round_up(x, m):
    return (x + m - 1) // m * m


def _pick_tile(size, unit, max_tile):
    """unit-aligned tile <= max_tile; prefer >=2 tiles so a "parallel" grid
    axis has something to shard across dual TensorCores (v7x)."""
    t = min(size, max_tile)
    if size > unit and pl.cdiv(size, t) < 2:
        t = max(unit, _round_up(size // 2, unit))
    return t


# ---------------------------------------------------------------------------
# Pallas kernels
# ---------------------------------------------------------------------------

def _conv_relu_pool_kernel(w_ref, b_ref, p_ref, o_ref):
    """relu(maxpool2x2(conv + b)) == relu(max_s(W @ P_s) + b).

    w_ref: (Cout, K) bf16, b_ref: (Cout, 1) f32, p_ref: (4, K, TM) bf16,
    o_ref: (Cout, TM) bf16.  s indexes the 4 positions of each 2x2 pool window;
    max/relu commute with the shared bias add, so pooling folds into an
    elementwise max of four MXU matmuls with f32 accumulation.
    """
    w = w_ref[...]
    acc = jnp.dot(w, p_ref[0], preferred_element_type=jnp.float32)
    for s in (1, 2, 3):
        acc = jnp.maximum(
            acc, jnp.dot(w, p_ref[s], preferred_element_type=jnp.float32))
    o_ref[...] = jnp.maximum(acc + b_ref[...], 0.0).astype(o_ref.dtype)


def _mlp_kernel(x_ref, w1_ref, b1_ref, w2_ref, b2_ref, w3_ref, b3_ref, o_ref):
    """fc1+relu -> fc2+relu -> fc3 fused; 128-lane-padded widths, bf16 matmuls,
    f32 accumulation; all weights (~0.2 MiB) resident in VMEM."""
    h = jnp.dot(x_ref[...], w1_ref[...], preferred_element_type=jnp.float32)
    h = jnp.maximum(h + b1_ref[...], 0.0).astype(w2_ref.dtype)
    h = jnp.dot(h, w2_ref[...], preferred_element_type=jnp.float32)
    h = jnp.maximum(h + b2_ref[...], 0.0).astype(w3_ref.dtype)
    o_ref[...] = (jnp.dot(h, w3_ref[...], preferred_element_type=jnp.float32)
                  + b3_ref[...]).astype(o_ref.dtype)


# ---------------------------------------------------------------------------
# XLA glue: pooled im2col patch extraction (channel-major, bf16, lane-padded)
# ---------------------------------------------------------------------------

def _pool_patches(x_cnhw, kh, kw):
    """x_cnhw: (C, N, H, W). VALID conv (kh,kw) followed by 2x2 max-pool.

    Returns bf16 patches of shape (4, C*kh*kw, Mp) where s = di*2+dj enumerates
    the pool-window offset, K is ordered (c, ki, kj) to match the PyTorch OIHW
    weight flatten, M is ordered (n, ph, pw), and Mp = M rounded up to a
    multiple of 128 (zero pad) so every kernel store is lane-dense.
    """
    c, n, h, w = x_cnhw.shape
    oh, ow = h - kh + 1, w - kw + 1
    assert oh % 2 == 0 and ow % 2 == 0, "2x2 max-pool needs even conv output dims"
    ph, pw = oh // 2, ow // 2
    groups = []
    for di in (0, 1):
        for dj in (0, 1):
            taps = jnp.stack(
                [x_cnhw[:, :,
                        di + ki: di + ki + 2 * ph: 2,
                        dj + kj: dj + kj + 2 * pw: 2]
                 for ki in range(kh) for kj in range(kw)],
                axis=1)                                   # (C, kh*kw, N, PH, PW)
            groups.append(taps.reshape(c * kh * kw, n * ph * pw))
    patches = jnp.stack(groups, axis=0).astype(jnp.bfloat16)   # (4, K, M)
    m = n * ph * pw
    mp = _round_up(m, _LANE)
    if mp != m:
        patches = jnp.pad(patches, ((0, 0), (0, 0), (0, mp - m)))
    return patches, ph, pw


# ---------------------------------------------------------------------------
# Stage wrappers (pallas_call with grids)
# ---------------------------------------------------------------------------

def conv_relu_pool(x_cnhw, w_mat, b_col, *, kh=5, kw=5, tm_max=2048):
    """x_cnhw: (Cin, N, H, W); w_mat: (Cout, Cin*kh*kw) bf16; b_col: (Cout,1) f32.

    Returns the pooled activation as (Cout, N, PH, PW) in bf16 (channel-major,
    so the next stage needs no weight-side transpose).
    """
    cout = w_mat.shape[0]
    n = x_cnhw.shape[1]
    patches, ph, pw = _pool_patches(x_cnhw, kh, kw)       # (4, K, Mp) bf16
    _, K, mp = patches.shape
    m = n * ph * pw

    tm = _pick_tile(mp, _LANE, tm_max)                    # multiple of 128
    grid = (pl.cdiv(mp, tm),)

    y = pl.pallas_call(
        _conv_relu_pool_kernel,
        out_shape=jax.ShapeDtypeStruct((cout, mp), jnp.bfloat16),
        grid_spec=pltpu.PrefetchScalarGridSpec(
            num_scalar_prefetch=0,
            grid=grid,
            in_specs=[
                pl.BlockSpec((cout, K), lambda i: (0, 0)),      # weights resident
                pl.BlockSpec((cout, 1), lambda i: (0, 0)),      # bias resident
                pl.BlockSpec((4, K, tm), lambda i: (0, 0, i)),  # patch tile
            ],
            out_specs=pl.BlockSpec((cout, tm), lambda i: (0, i)),
        ),
        compiler_params=pltpu.CompilerParams(
            dimension_semantics=("parallel",)),
    )(w_mat, b_col, patches)
    return y[:, :m].reshape(cout, n, ph, pw)


def mlp(feat, kp, *, tb_max=1024):
    """feat: (N, 400) bf16 -> (N, 128) f32 logits (lane-padded; slice to 10)."""
    n, k = feat.shape
    d1 = kp["fc1_w"].shape[1]
    d2 = kp["fc2_w"].shape[1]
    d3 = kp["fc3_w"].shape[1]
    tb = _pick_tile(n, _SUB, tb_max)
    grid = (pl.cdiv(n, tb),)

    return pl.pallas_call(
        _mlp_kernel,
        out_shape=jax.ShapeDtypeStruct((n, d3), jnp.float32),
        grid_spec=pltpu.PrefetchScalarGridSpec(
            num_scalar_prefetch=0,
            grid=grid,
            in_specs=[
                pl.BlockSpec((tb, k), lambda i: (i, 0)),
                pl.BlockSpec((k, d1), lambda i: (0, 0)),
                pl.BlockSpec((1, d1), lambda i: (0, 0)),
                pl.BlockSpec((d1, d2), lambda i: (0, 0)),
                pl.BlockSpec((1, d2), lambda i: (0, 0)),
                pl.BlockSpec((d2, d3), lambda i: (0, 0)),
                pl.BlockSpec((1, d3), lambda i: (0, 0)),
            ],
            out_specs=pl.BlockSpec((tb, d3), lambda i: (i, 0)),
        ),
        compiler_params=pltpu.CompilerParams(
            dimension_semantics=("parallel",)),
    )(feat, kp["fc1_w"], kp["fc1_b"], kp["fc2_w"], kp["fc2_b"],
      kp["fc3_w"], kp["fc3_b"])


# ---------------------------------------------------------------------------
# Model
# ---------------------------------------------------------------------------

def init_params(key):
    """PyTorch-layout parameters (Conv2d OIHW, Linear (out,in)), float32."""
    ks = jax.random.split(key, 10)

    def u(k, shape, fan_in):
        bound = 1.0 / float(fan_in) ** 0.5
        return jax.random.uniform(k, shape, jnp.float32, -bound, bound)

    return {
        "conv1_w": u(ks[0], (6, 1, 5, 5), 1 * 5 * 5),
        "conv1_b": u(ks[1], (6,), 1 * 5 * 5),
        "conv2_w": u(ks[2], (16, 6, 5, 5), 6 * 5 * 5),
        "conv2_b": u(ks[3], (16,), 6 * 5 * 5),
        "fc1_w":   u(ks[4], (120, 16 * 5 * 5), 16 * 5 * 5),
        "fc1_b":   u(ks[5], (120,), 16 * 5 * 5),
        "fc2_w":   u(ks[6], (84, 120), 120),
        "fc2_b":   u(ks[7], (84,), 120),
        "fc3_w":   u(ks[8], (10, 84), 84),
        "fc3_b":   u(ks[9], (10,), 84),
    }


def prepare_params(params):
    """One-time re-layout: pre-flattened/transposed, zero-padded to 128-lane
    widths, weights cast to bf16 (biases stay f32 for the post-accum add)."""
    bf = jnp.bfloat16
    f32 = jnp.float32

    def pad2(a, rows, cols):
        return jnp.pad(a, ((0, rows - a.shape[0]), (0, cols - a.shape[1])))

    def padb(b, cols):
        return jnp.pad(b, (0, cols - b.shape[0])).reshape(1, cols).astype(f32)

    w1 = params["fc1_w"].T                                 # (400, 120)
    w2 = params["fc2_w"].T                                 # (120, 84)
    w3 = params["fc3_w"].T                                 # (84, 10)
    return {
        "c1_w": params["conv1_w"].reshape(6, 25).astype(bf),     # (Cout, K)
        "c1_b": params["conv1_b"].reshape(6, 1).astype(f32),
        "c2_w": params["conv2_w"].reshape(16, 150).astype(bf),
        "c2_b": params["conv2_b"].reshape(16, 1).astype(f32),
        "fc1_w": pad2(w1, 400, _LANE).astype(bf),                # (400, 128)
        "fc1_b": padb(params["fc1_b"], _LANE),
        "fc2_w": pad2(w2, _LANE, _LANE).astype(bf),              # (128, 128)
        "fc2_b": padb(params["fc2_b"], _LANE),
        "fc3_w": pad2(w3, _LANE, _LANE).astype(bf),              # (128, 128)
        "fc3_b": padb(params["fc3_b"], _LANE),
    }


def net_forward(kp, x):
    """x: (N, 1, 32, 32) NCHW float32 -> (N, 10). Same semantics as PyTorch Net."""
    n = x.shape[0]
    x_c = x.astype(jnp.bfloat16).transpose(1, 0, 2, 3)           # (1, N, 32, 32)
    y1 = conv_relu_pool(x_c, kp["c1_w"], kp["c1_b"])             # (6,  N, 14, 14)
    y2 = conv_relu_pool(y1, kp["c2_w"], kp["c2_b"])              # (16, N,  5,  5)
    # TODO(synk): fold this transpose/flatten into the conv2 pallas_call once a
    # Mosaic-friendly in-kernel (C, N*PH*PW) -> (N, C*PH*PW) relayout is viable.
    feat = y2.transpose(1, 0, 2, 3).reshape(n, -1)               # (N, 400) bf16
    logits = mlp(feat, kp)                                       # (N, 128) f32
    return logits[:, :10]


def ref_forward(params, x):
    """Pure-JAX float32 reference (PyTorch semantics) for correctness checking."""
    def conv(x, w, b):
        y = jax.lax.conv_general_dilated(
            x, w, window_strides=(1, 1), padding="VALID",
            dimension_numbers=("NCHW", "OIHW", "NCHW"))
        return jax.nn.relu(y + b.reshape(1, -1, 1, 1))

    def pool(x):
        return jax.lax.reduce_window(x, -jnp.inf, jax.lax.max,
                                     (1, 1, 2, 2), (1, 1, 2, 2), "VALID")

    x = pool(conv(x, params["conv1_w"], params["conv1_b"]))
    x = pool(conv(x, params["conv2_w"], params["conv2_b"]))
    x = x.reshape(x.shape[0], -1)
    x = jax.nn.relu(x @ params["fc1_w"].T + params["fc1_b"])
    x = jax.nn.relu(x @ params["fc2_w"].T + params["fc2_b"])
    return x @ params["fc3_w"].T + params["fc3_b"]


if __name__ == "__main__":
    key = jax.random.PRNGKey(0)
    k_params, k_x = jax.random.split(key)
    params = init_params(k_params)
    kparams = prepare_params(params)
    # batch=2, 1 channel, 32x32 spatial (required by fc1 = 16*5*5 features)
    x = jax.random.normal(k_x, (2, 1, 32, 32), dtype=jnp.float32)

    fwd = jax.jit(net_forward)
    out = jax.block_until_ready(fwd(kparams, x))
    ref = jax.block_until_ready(ref_forward(params, x))

    assert out.shape == (2, 10), out.shape
    # Kernel uses bf16 matmul operands (f32 accumulation); compare loosely vs
    # the float32 reference.
    assert jnp.allclose(out, ref, rtol=3e-2, atol=3e-2), "mismatch vs reference"
    print("KERNEL_OK")
</pallas_src>

<mosaic_0001>
module attributes {stable_mosaic.version = 11 : i64} {
  func.func @_conv_relu_pool_kernel(%arg0: i32, %arg1: memref<6x25xbf16, #tpu.memory_space<vmem>>, %arg2: memref<6x1xf32, #tpu.memory_space<vmem>>, %arg3: memref<4x25x256xbf16, #tpu.memory_space<vmem>>, %arg4: memref<6x256xbf16, #tpu.memory_space<vmem>>) attributes {dimension_semantics = [#tpu.dimension_semantics<parallel>], iteration_bounds = array<i64: 2>, scalar_prefetch = 0 : i64, scratch_operands = 0 : i64, tpu.core_type = #tpu.core_type<tc>, window_params = [{pipeline_mode = #tpu.pipeline_mode<synchronous>, transform_indices = @transform_0, window_bounds = array<i64: 6, 25>}, {pipeline_mode = #tpu.pipeline_mode<synchronous>, transform_indices = @transform_1, window_bounds = array<i64: 6, 1>}, {transform_indices = @transform_2, window_bounds = array<i64: 4, 25, 256>}, {transform_indices = @transform_3, window_bounds = array<i64: 6, 256>}]} {
    %c0 = arith.constant 0 : index
    %c0_0 = arith.constant 0 : index
    %0 = vector.load %arg1[%c0, %c0_0] : memref<6x25xbf16, #tpu.memory_space<vmem>>, vector<6x25xbf16>
    %c0_1 = arith.constant 0 : index
    %c0_2 = arith.constant 0 : index
    %c0_3 = arith.constant 0 : index
    %1 = vector.load %arg3[%c0_1, %c0_2, %c0_3] : memref<4x25x256xbf16, #tpu.memory_space<vmem>>, vector<1x25x256xbf16>
    %2 = vector.shape_cast %1 : vector<1x25x256xbf16> to vector<25x256xbf16>
    %cst = arith.constant dense<0.000000e+00> : vector<6x256xf32>
    %3 = tpu.matmul %0, %2, %cst {dimension_numbers = #tpu.dot_dimension_numbers<[1], [0], [0], [1], [0, 0, 1, 1], [], []>} : vector<6x25xbf16>, vector<25x256xbf16>, vector<6x256xf32> -> vector<6x256xf32>
    %c1 = arith.constant 1 : index
    %c0_4 = arith.constant 0 : index
    %c0_5 = arith.constant 0 : index
    %4 = vector.load %arg3[%c1, %c0_4, %c0_5] : memref<4x25x256xbf16, #tpu.memory_space<vmem>>, vector<1x25x256xbf16>
    %5 = vector.shape_cast %4 : vector<1x25x256xbf16> to vector<25x256xbf16>
    %cst_6 = arith.constant dense<0.000000e+00> : vector<6x256xf32>
    %6 = tpu.matmul %0, %5, %cst_6 {dimension_numbers = #tpu.dot_dimension_numbers<[1], [0], [0], [1], [0, 0, 1, 1], [], []>} : vector<6x25xbf16>, vector<25x256xbf16>, vector<6x256xf32> -> vector<6x256xf32>
    %7 = arith.maximumf %3, %6 : vector<6x256xf32>
    %c2 = arith.constant 2 : index
    %c0_7 = arith.constant 0 : index
    %c0_8 = arith.constant 0 : index
    %8 = vector.load %arg3[%c2, %c0_7, %c0_8] : memref<4x25x256xbf16, #tpu.memory_space<vmem>>, vector<1x25x256xbf16>
    %9 = vector.shape_cast %8 : vector<1x25x256xbf16> to vector<25x256xbf16>
    %cst_9 = arith.constant dense<0.000000e+00> : vector<6x256xf32>
    %10 = tpu.matmul %0, %9, %cst_9 {dimension_numbers = #tpu.dot_dimension_numbers<[1], [0], [0], [1], [0, 0, 1, 1], [], []>} : vector<6x25xbf16>, vector<25x256xbf16>, vector<6x256xf32> -> vector<6x256xf32>
    %11 = arith.maximumf %7, %10 : vector<6x256xf32>
    %c3 = arith.constant 3 : index
    %c0_10 = arith.constant 0 : index
    %c0_11 = arith.constant 0 : index
    %12 = vector.load %arg3[%c3, %c0_10, %c0_11] : memref<4x25x256xbf16, #tpu.memory_space<vmem>>, vector<1x25x256xbf16>
    %13 = vector.shape_cast %12 : vector<1x25x256xbf16> to vector<25x256xbf16>
    %cst_12 = arith.constant dense<0.000000e+00> : vector<6x256xf32>
    %14 = tpu.matmul %0, %13, %cst_12 {dimension_numbers = #tpu.dot_dimension_numbers<[1], [0], [0], [1], [0, 0, 1, 1], [], []>} : vector<6x25xbf16>, vector<25x256xbf16>, vector<6x256xf32> -> vector<6x256xf32>
    %15 = arith.maximumf %11, %14 : vector<6x256xf32>
    %c0_13 = arith.constant 0 : index
    %c0_14 = arith.constant 0 : index
    %16 = vector.load %arg2[%c0_13, %c0_14] : memref<6x1xf32, #tpu.memory_space<vmem>>, vector<6x1xf32>
    %17 = vector.broadcast %16 : vector<6x1xf32> to vector<6x256xf32>
    %18 = arith.addf %15, %17 : vector<6x256xf32>
    %cst_15 = arith.constant 0.000000e+00 : f32
    %19 = vector.broadcast %cst_15 : f32 to vector<6x256xf32>
    %20 = arith.maximumf %18, %19 : vector<6x256xf32>
    %21 = arith.truncf %20 : vector<6x256xf32> to vector<6x256xbf16>
    %c0_16 = arith.constant 0 : index
    %c0_17 = arith.constant 0 : index
    %22 = vector.load %arg4[%c0_16, %c0_17] : memref<6x256xbf16, #tpu.memory_space<vmem>>, vector<6x256xbf16>
    tpu.vector_store %arg4[%c0_16, %c0_17], %21 {strides = array<i32>} : memref<6x256xbf16, #tpu.memory_space<vmem>>, vector<6x256xbf16>,
    return
  }
  func.func @transform_0(%arg0: i32) -> (i32, i32) {
    %c0_i32 = arith.constant 0 : i32
    %c0_i32_0 = arith.constant 0 : i32
    %c0_i32_1 = arith.constant 0 : i32
    return %c0_i32, %c0_i32_0 : i32, i32
  }
  func.func @transform_1(%arg0: i32) -> (i32, i32) {
    %c0_i32 = arith.constant 0 : i32
    %c0_i32_0 = arith.constant 0 : i32
    %c0_i32_1 = arith.constant 0 : i32
    return %c0_i32, %c0_i32_0 : i32, i32
  }
  func.func @transform_2(%arg0: i32) -> (i32, i32, i32) {
    %c0_i32 = arith.constant 0 : i32
    %c0_i32_0 = arith.constant 0 : i32
    %c0_i32_1 = arith.constant 0 : i32
    return %c0_i32, %c0_i32_0, %arg0 : i32, i32, i32
  }
  func.func @transform_3(%arg0: i32) -> (i32, i32) {
    %c0_i32 = arith.constant 0 : i32
    %c0_i32_0 = arith.constant 0 : i32
    return %c0_i32, %arg0 : i32, i32
  }
}

module attributes {stable_mosaic.version = 11 : i64} {
  func.func @_conv_relu_pool_kernel(%arg0: i32, %arg1: memref<16x150xbf16, #tpu.memory_space<vmem>>, %arg2: memref<16x1xf32, #tpu.memory_space<vmem>>, %arg3: memref<4x150x128xbf16, #tpu.memory_space<vmem>>, %arg4: memref<16x128xbf16, #tpu.memory_space<vmem>>) attributes {dimension_semantics = [#tpu.dimension_semantics<parallel>], iteration_bounds = array<i64: 1>, scalar_prefetch = 0 : i64, scratch_operands = 0 : i64, tpu.core_type = #tpu.core_type<tc>, window_params = [{pipeline_mode = #tpu.pipeline_mode<synchronous>, transform_indices = @transform_0, window_bounds = array<i64: 16, 150>}, {pipeline_mode = #tpu.pipeline_mode<synchronous>, transform_indices = @transform_1, window_bounds = array<i64: 16, 1>}, {transform_indices = @transform_2, window_bounds = array<i64: 4, 150, 128>}, {transform_indices = @transform_3, window_bounds = array<i64: 16, 128>}]} {
    %c0 = arith.constant 0 : index
    %c0_0 = arith.constant 0 : index
    %0 = vector.load %arg1[%c0, %c0_0] : memref<16x150xbf16, #tpu.memory_space<vmem>>, vector<16x150xbf16>
    %c0_1 = arith.constant 0 : index
    %c0_2 = arith.constant 0 : index
    %c0_3 = arith.constant 0 : index
    %1 = vector.load %arg3[%c0_1, %c0_2, %c0_3] : memref<4x150x128xbf16, #tpu.memory_space<vmem>>, vector<1x150x128xbf16>
    %2 = vector.shape_cast %1 : vector<1x150x128xbf16> to vector<150x128xbf16>
    %cst = arith.constant dense<0.000000e+00> : vector<16x128xf32>
    %3 = tpu.matmul %0, %2, %cst {dimension_numbers = #tpu.dot_dimension_numbers<[1], [0], [0], [1], [0, 0, 1, 1], [], []>} : vector<16x150xbf16>, vector<150x128xbf16>, vector<16x128xf32> -> vector<16x128xf32>
    %c1 = arith.constant 1 : index
    %c0_4 = arith.constant 0 : index
    %c0_5 = arith.constant 0 : index
    %4 = vector.load %arg3[%c1, %c0_4, %c0_5] : memref<4x150x128xbf16, #tpu.memory_space<vmem>>, vector<1x150x128xbf16>
    %5 = vector.shape_cast %4 : vector<1x150x128xbf16> to vector<150x128xbf16>
    %cst_6 = arith.constant dense<0.000000e+00> : vector<16x128xf32>
    %6 = tpu.matmul %0, %5, %cst_6 {dimension_numbers = #tpu.dot_dimension_numbers<[1], [0], [0], [1], [0, 0, 1, 1], [], []>} : vector<16x150xbf16>, vector<150x128xbf16>, vector<16x128xf32> -> vector<16x128xf32>
    %7 = arith.maximumf %3, %6 : vector<16x128xf32>
    %c2 = arith.constant 2 : index
    %c0_7 = arith.constant 0 : index
    %c0_8 = arith.constant 0 : index
    %8 = vector.load %arg3[%c2, %c0_7, %c0_8] : memref<4x150x128xbf16, #tpu.memory_space<vmem>>, vector<1x150x128xbf16>
    %9 = vector.shape_cast %8 : vector<1x150x128xbf16> to vector<150x128xbf16>
    %cst_9 = arith.constant dense<0.000000e+00> : vector<16x128xf32>
    %10 = tpu.matmul %0, %9, %cst_9 {dimension_numbers = #tpu.dot_dimension_numbers<[1], [0], [0], [1], [0, 0, 1, 1], [], []>} : vector<16x150xbf16>, vector<150x128xbf16>, vector<16x128xf32> -> vector<16x128xf32>
    %11 = arith.maximumf %7, %10 : vector<16x128xf32>
    %c3 = arith.constant 3 : index
    %c0_10 = arith.constant 0 : index
    %c0_11 = arith.constant 0 : index
    %12 = vector.load %arg3[%c3, %c0_10, %c0_11] : memref<4x150x128xbf16, #tpu.memory_space<vmem>>, vector<1x150x128xbf16>
    %13 = vector.shape_cast %12 : vector<1x150x128xbf16> to vector<150x128xbf16>
    %cst_12 = arith.constant dense<0.000000e+00> : vector<16x128xf32>
    %14 = tpu.matmul %0, %13, %cst_12 {dimension_numbers = #tpu.dot_dimension_numbers<[1], [0], [0], [1], [0, 0, 1, 1], [], []>} : vector<16x150xbf16>, vector<150x128xbf16>, vector<16x128xf32> -> vector<16x128xf32>
    %15 = arith.maximumf %11, %14 : vector<16x128xf32>
    %c0_13 = arith.constant 0 : index
    %c0_14 = arith.constant 0 : index
    %16 = vector.load %arg2[%c0_13, %c0_14] : memref<16x1xf32, #tpu.memory_space<vmem>>, vector<16x1xf32>
    %17 = vector.broadcast %16 : vector<16x1xf32> to vector<16x128xf32>
    %18 = arith.addf %15, %17 : vector<16x128xf32>
    %cst_15 = arith.constant 0.000000e+00 : f32
    %19 = vector.broadcast %cst_15 : f32 to vector<16x128xf32>
    %20 = arith.maximumf %18, %19 : vector<16x128xf32>
    %21 = arith.truncf %20 : vector<16x128xf32> to vector<16x128xbf16>
    %c0_16 = arith.constant 0 : index
    %c0_17 = arith.constant 0 : index
    %22 = vector.load %arg4[%c0_16, %c0_17] : memref<16x128xbf16, #tpu.memory_space<vmem>>, vector<16x128xbf16>
    tpu.vector_store %arg4[%c0_16, %c0_17], %21 {strides = array<i32>} : memref<16x128xbf16, #tpu.memory_space<vmem>>, vector<16x128xbf16>,
    return
  }
  func.func @transform_0(%arg0: i32) -> (i32, i32) {
    %c0_i32 = arith.constant 0 : i32
    %c0_i32_0 = arith.constant 0 : i32
    %c0_i32_1 = arith.constant 0 : i32
    return %c0_i32, %c0_i32_0 : i32, i32
  }
  func.func @transform_1(%arg0: i32) -> (i32, i32) {
    %c0_i32 = arith.constant 0 : i32
    %c0_i32_0 = arith.constant 0 : i32
    %c0_i32_1 = arith.constant 0 : i32
    return %c0_i32, %c0_i32_0 : i32, i32
  }
  func.func @transform_2(%arg0: i32) -> (i32, i32, i32) {
    %c0_i32 = arith.constant 0 : i32
    %c0_i32_0 = arith.constant 0 : i32
    %c0_i32_1 = arith.constant 0 : i32
    return %c0_i32, %c0_i32_0, %arg0 : i32, i32, i32
  }
  func.func @transform_3(%arg0: i32) -> (i32, i32) {
    %c0_i32 = arith.constant 0 : i32
    %c0_i32_0 = arith.constant 0 : i32
    return %c0_i32, %arg0 : i32, i32
  }
}

module attributes {stable_mosaic.version = 11 : i64} {
  func.func @_mlp_kernel(%arg0: i32, %arg1: memref<2x400xbf16, #tpu.memory_space<vmem>>, %arg2: memref<400x128xbf16, #tpu.memory_space<vmem>>, %arg3: memref<1x128xf32, #tpu.memory_space<vmem>>, %arg4: memref<128x128xbf16, #tpu.memory_space<vmem>>, %arg5: memref<1x128xf32, #tpu.memory_space<vmem>>, %arg6: memref<128x128xbf16, #tpu.memory_space<vmem>>, %arg7: memref<1x128xf32, #tpu.memory_space<vmem>>, %arg8: memref<2x128xf32, #tpu.memory_space<vmem>>) attributes {dimension_semantics = [#tpu.dimension_semantics<parallel>], iteration_bounds = array<i64: 1>, scalar_prefetch = 0 : i64, scratch_operands = 0 : i64, tpu.core_type = #tpu.core_type<tc>, window_params = [{transform_indices = @transform_0, window_bounds = array<i64: 2, 400>}, {pipeline_mode = #tpu.pipeline_mode<synchronous>, transform_indices = @transform_1, window_bounds = array<i64: 400, 128>}, {pipeline_mode = #tpu.pipeline_mode<synchronous>, transform_indices = @transform_2, window_bounds = array<i64: 1, 128>}, {pipeline_mode = #tpu.pipeline_mode<synchronous>, transform_indices = @transform_3, window_bounds = array<i64: 128, 128>}, {pipeline_mode = #tpu.pipeline_mode<synchronous>, transform_indices = @transform_4, window_bounds = array<i64: 1, 128>}, {pipeline_mode = #tpu.pipeline_mode<synchronous>, transform_indices = @transform_5, window_bounds = array<i64: 128, 128>}, {pipeline_mode = #tpu.pipeline_mode<synchronous>, transform_indices = @transform_6, window_bounds = array<i64: 1, 128>}, {transform_indices = @transform_7, window_bounds = array<i64: 2, 128>}]} {
    %c0 = arith.constant 0 : index
    %c0_0 = arith.constant 0 : index
    %0 = vector.load %arg1[%c0, %c0_0] : memref<2x400xbf16, #tpu.memory_space<vmem>>, vector<2x400xbf16>
    %c0_1 = arith.constant 0 : index
    %c0_2 = arith.constant 0 : index
    %1 = vector.load %arg2[%c0_1, %c0_2] : memref<400x128xbf16, #tpu.memory_space<vmem>>, vector<400x128xbf16>
    %cst = arith.constant dense<0.000000e+00> : vector<2x128xf32>
    %2 = tpu.matmul %0, %1, %cst {dimension_numbers = #tpu.dot_dimension_numbers<[1], [0], [0], [1], [0, 0, 1, 1], [], []>} : vector<2x400xbf16>, vector<400x128xbf16>, vector<2x128xf32> -> vector<2x128xf32>
    %c0_3 = arith.constant 0 : index
    %c0_4 = arith.constant 0 : index
    %3 = vector.load %arg3[%c0_3, %c0_4] : memref<1x128xf32, #tpu.memory_space<vmem>>, vector<1x128xf32>
    %4 = vector.broadcast %3 : vector<1x128xf32> to vector<2x128xf32>
    %5 = arith.addf %2, %4 : vector<2x128xf32>
    %cst_5 = arith.constant 0.000000e+00 : f32
    %6 = vector.broadcast %cst_5 : f32 to vector<2x128xf32>
    %7 = arith.maximumf %5, %6 : vector<2x128xf32>
    %8 = arith.truncf %7 : vector<2x128xf32> to vector<2x128xbf16>
    %c0_6 = arith.constant 0 : index
    %c0_7 = arith.constant 0 : index
    %9 = vector.load %arg4[%c0_6, %c0_7] : memref<128x128xbf16, #tpu.memory_space<vmem>>, vector<128x128xbf16>
    %cst_8 = arith.constant dense<0.000000e+00> : vector<2x128xf32>
    %10 = tpu.matmul %8, %9, %cst_8 {dimension_numbers = #tpu.dot_dimension_numbers<[1], [0], [0], [1], [0, 0, 1, 1], [], []>} : vector<2x128xbf16>, vector<128x128xbf16>, vector<2x128xf32> -> vector<2x128xf32>
    %c0_9 = arith.constant 0 : index
    %c0_10 = arith.constant 0 : index
    %11 = vector.load %arg5[%c0_9, %c0_10] : memref<1x128xf32, #tpu.memory_space<vmem>>, vector<1x128xf32>
    %12 = vector.broadcast %11 : vector<1x128xf32> to vector<2x128xf32>
    %13 = arith.addf %10, %12 : vector<2x128xf32>
    %cst_11 = arith.constant 0.000000e+00 : f32
    %14 = vector.broadcast %cst_11 : f32 to vector<2x128xf32>
    %15 = arith.maximumf %13, %14 : vector<2x128xf32>
    %16 = arith.truncf %15 : vector<2x128xf32> to vector<2x128xbf16>
    %c0_12 = arith.constant 0 : index
    %c0_13 = arith.constant 0 : index
    %17 = vector.load %arg6[%c0_12, %c0_13] : memref<128x128xbf16, #tpu.memory_space<vmem>>, vector<128x128xbf16>
    %cst_14 = arith.constant dense<0.000000e+00> : vector<2x128xf32>
    %18 = tpu.matmul %16, %17, %cst_14 {dimension_numbers = #tpu.dot_dimension_numbers<[1], [0], [0], [1], [0, 0, 1, 1], [], []>} : vector<2x128xbf16>, vector<128x128xbf16>, vector<2x128xf32> -> vector<2x128xf32>
    %c0_15 = arith.constant 0 : index
    %c0_16 = arith.constant 0 : index
    %19 = vector.load %arg7[%c0_15, %c0_16] : memref<1x128xf32, #tpu.memory_space<vmem>>, vector<1x128xf32>
    %20 = vector.broadcast %19 : vector<1x128xf32> to vector<2x128xf32>
    %21 = arith.addf %18, %20 : vector<2x128xf32>
    %c0_17 = arith.constant 0 : index
    %c0_18 = arith.constant 0 : index
    %22 = vector.load %arg8[%c0_17, %c0_18] : memref<2x128xf32, #tpu.memory_space<vmem>>, vector<2x128xf32>
    tpu.vector_store %arg8[%c0_17, %c0_18], %21 {strides = array<i32>} : memref<2x128xf32, #tpu.memory_space<vmem>>, vector<2x128xf32>,
    return
  }
  func.func @transform_0(%arg0: i32) -> (i32, i32) {
    %c0_i32 = arith.constant 0 : i32
    %c0_i32_0 = arith.constant 0 : i32
    return %arg0, %c0_i32 : i32, i32
  }
  func.func @transform_1(%arg0: i32) -> (i32, i32) {
    %c0_i32 = arith.constant 0 : i32
    %c0_i32_0 = arith.constant 0 : i32
    %c0_i32_1 = arith.constant 0 : i32
    return %c0_i32, %c0_i32_0 : i32, i32
  }
  func.func @transform_2(%arg0: i32) -> (i32, i32) {
    %c0_i32 = arith.constant 0 : i32
    %c0_i32_0 = arith.constant 0 : i32
    %c0_i32_1 = arith.constant 0 : i32
    return %c0_i32, %c0_i32_0 : i32, i32
  }
  func.func @transform_3(%arg0: i32) -> (i32, i32) {
    %c0_i32 = arith.constant 0 : i32
    %c0_i32_0 = arith.constant 0 : i32
    %c0_i32_1 = arith.constant 0 : i32
    return %c0_i32, %c0_i32_0 : i32, i32
  }
  func.func @transform_4(%arg0: i32) -> (i32, i32) {
    %c0_i32 = arith.constant 0 : i32
    %c0_i32_0 = arith.constant 0 : i32
    %c0_i32_1 = arith.constant 0 : i32
    return %c0_i32, %c0_i32_0 : i32, i32
  }
  func.func @transform_5(%arg0: i32) -> (i32, i32) {
    %c0_i32 = arith.constant 0 : i32
    %c0_i32_0 = arith.constant 0 : i32
    %c0_i32_1 = arith.constant 0 : i32
    return %c0_i32, %c0_i32_0 : i32, i32
  }
  func.func @transform_6(%arg0: i32) -> (i32, i32) {
    %c0_i32 = arith.constant 0 : i32
    %c0_i32_0 = arith.constant 0 : i32
    %c0_i32_1 = arith.constant 0 : i32
    return %c0_i32, %c0_i32_0 : i32, i32
  }
  func.func @transform_7(%arg0: i32) -> (i32, i32) {
    %c0_i32 = arith.constant 0 : i32
    %c0_i32_0 = arith.constant 0 : i32
    return %arg0, %c0_i32 : i32, i32
  }
}

</mosaic_0001>

<llo_original>
// kernel: net_forward.3
$region0: #{net_forward.3}
  #allocation0 [shape = 'u32[]', space=smem, size = 0x4, offset = 0x4, fixed_abs, tag = 'smem constant byte address 0x4 - core index']
  #allocation1 [shape = 'u32[72,128]{1,0:T(1,128)}', space=vmem, size = 0x9000, scoped, tag = 'internal scratch']
  %s0 = inlined_call_operand.vmem [shape: bf16[6,25], index: 0, kind: input, shape index: {}]
  %s1 = inlined_call_operand.vmem [shape: f32[6,1], index: 1, kind: input, shape index: {}]
  %s2 = inlined_call_operand.vmem [shape: bf16[4,25,512], index: 2, kind: input, shape index: {}]
  %s3 = inlined_call_operand.vmem [shape: bf16[6,512], index: 3, kind: output, shape index: {}]
  %s4 = sld [smem:[#allocation0]]
  $region83: #{net_forward.3} parent=0
    _
  %s6 = ssub.s32 1, %s4
  %s7 = scalar_select 0, %s6, %s4
  $region1: #{net_forward.3} parent=0
    #allocation2 [shape = 'u8[131072]{0}', space=vmem, size = 0x20000, scoped, tag = 'input window, operand 2']
    loop: start=0, step=1, limit=4
    $region2: #{net_forward.3} parent=1 // loop_pre_header
      _
    $region3: #{net_forward.3} parent=1 // loop_header
      %s9 = sphi 0, %s13
      %p10 = scmp.ge.s32.totalorder %s9, 4
      %s17 = sphi 0, %s17
      %s19 = sphi 0, %s17
      %s20 = sphi 0, %s19
      %s34 = sphi 0, %s20
      %s38 = sphi 0, %s38
      %s40 = sphi 0, %s38
      %s41 = sphi 0, %s40
      %s55 = sphi 0, %s41
      %s61 = sphi 0, %s63
      %s64 = sphi 0, %s61
      %s65 = sphi 0, %s64
      %s81 = sphi 0, %s65
      %s87 = sphi 0, %s89
      %s90 = sphi 0, %s87
      %s91 = sphi 0, %s90
      %s107 = sphi 0, %s91
    $region4: #{net_forward.3} parent=1 // loop_header_branch
      %12 = sbr.rel (%p10) target = $region8
    $region5: #{net_forward.3} parent=1 // loop_body
      %s14 = ssub.s32 %s9, 1
      %s15 = ssub.s32 %s9, 2
      %s16 = sadd.s32 %s9, 1
      %s18 = sadd.s32 %s17, 1
      %p21 = scmp.eq.s32.totalorder %s9, 1
      %p22 = scmp.ne.s32.totalorder %s17, %s19
      %p23 = scmp.eq.s32.totalorder %s9, 0
      %p24 = por %p22, %p23
      %p25 = scmp.ne.s32.totalorder %s17, %s19
      %p26 = scmp.eq.s32.totalorder %s14, 1
      %p27 = por %p25, %p26
      %p28 = scmp.ne.s32.totalorder %s19, %s20
      %p29 = scmp.eq.s32.totalorder %s14, 0
      %p30 = por %p28, %p29
      %p31 = scmp.ne.s32.totalorder %s19, %s20
      %p32 = scmp.eq.s32.totalorder %s15, 1
      %p33 = por %p31, %p32
      %p35 = scmp.ne.s32.totalorder %s20, %s34
      %p36 = scmp.eq.s32.totalorder %s15, 0
      %p37 = por %p35, %p36
      %s39 = sadd.s32 %s38, 1
      %p42 = scmp.eq.s32.totalorder %s9, 1
      %p43 = scmp.ne.s32.totalorder %s38, %s40
      %p44 = scmp.eq.s32.totalorder %s9, 0
      %p45 = por %p43, %p44
      %p46 = scmp.ne.s32.totalorder %s38, %s40
      %p47 = scmp.eq.s32.totalorder %s14, 1
      %p48 = por %p46, %p47
      %p49 = scmp.ne.s32.totalorder %s40, %s41
      %p50 = scmp.eq.s32.totalorder %s14, 0
      %p51 = por %p49, %p50
      %p52 = scmp.ne.s32.totalorder %s40, %s41
      %p53 = scmp.eq.s32.totalorder %s15, 1
      %p54 = por %p52, %p53
      %p56 = scmp.ne.s32.totalorder %s41, %s55
      %p57 = scmp.eq.s32.totalorder %s15, 0
      %p58 = por %p56, %p57
      %s59 = ssub.s32 %s9, %s16
      %p60 = scmp.eq.s32.totalorder %s59, 0
      %s62 = sadd.s32 %s61, 1
      %s63 = scalar_select %p60, %s61, %s62
      %p66 = pneg %p60
      %p67 = scmp.eq.s32.totalorder %s9, 1
      %p68 = por %p66, %p67
      %p69 = scmp.ne.s32.totalorder %s61, %s64
      %p70 = scmp.eq.s32.totalorder %s9, 0
      %p71 = por %p69, %p70
      %p72 = scmp.ne.s32.totalorder %s61, %s64
      %p73 = scmp.eq.s32.totalorder %s14, 1
      %p74 = por %p72, %p73
      %p75 = scmp.ne.s32.totalorder %s64, %s65
      %p76 = scmp.eq.s32.totalorder %s14, 0
      %p77 = por %p75, %p76
      %p78 = scmp.ne.s32.totalorder %s64, %s65
      %p79 = scmp.eq.s32.totalorder %s15, 1
      %p80 = por %p78, %p79
      %p82 = scmp.ne.s32.totalorder %s65, %s81
      %p83 = scmp.eq.s32.totalorder %s15, 0
      %p84 = por %p82, %p83
      %s85 = ssub.s32 %s9, %s16
      %p86 = scmp.eq.s32.totalorder %s85, 0
      %s88 = sadd.s32 %s87, 1
      %s89 = scalar_select %p86, %s87, %s88
      %p92 = pneg %p86
      %p93 = scmp.eq.s32.totalorder %s9, 1
      %p94 = por %p92, %p93
      %p95 = scmp.ne.s32.totalorder %s87, %s90
      %p96 = scmp.eq.s32.totalorder %s9, 0
      %p97 = por %p95, %p96
      %p98 = scmp.ne.s32.totalorder %s87, %s90
      %p99 = scmp.eq.s32.totalorder %s14, 1
      %p100 = por %p98, %p99
      %p101 = scmp.ne.s32.totalorder %s90, %s91
      %p102 = scmp.eq.s32.totalorder %s14, 0
      %p103 = por %p101, %p102
      %p104 = scmp.ne.s32.totalorder %s90, %s91
      %p105 = scmp.eq.s32.totalorder %s15, 1
      %p106 = por %p104, %p105
      %p108 = scmp.ne.s32.totalorder %s91, %s107
      %p109 = scmp.eq.s32.totalorder %s15, 0
      %p110 = por %p108, %p109
      %p111 = scmp.le.s32.totalorder 1, %s9
      %p112 = scmp.lt.s32.totalorder %s9, 3
      %p113 = pnand %p111, %p112
      %p114 = pneg %p113
      // Predicated region
      $region9: #{net_forward.3} parent=5 // pred_check
        _
      $region10: #{net_forward.3} parent=5 // pred_check_branch
        %116 = sbr.rel (%p113) target = $region12
      $region11: #{net_forward.3} parent=5 // pred_region
        %s117 = ssub.s32 %s9, 1
        // Predicated region
        $region13: #{net_forward.3} parent=11 // pred_check
          %p118 = pneg %p30
        $region14: #{net_forward.3} parent=11 // pred_check_branch
          %120 = sbr.rel (%p118) target = $region16
        $region15: #{net_forward.3} parent=11 // pred_region
          _
        $region16: #{net_forward.3} parent=11 // pred_fallthru
          _
        // Predicated region
        $region17: #{net_forward.3} parent=11 // pred_check
          %p121 = pneg %p51
        $region18: #{net_forward.3} parent=11 // pred_check_branch
          %123 = sbr.rel (%p121) target = $region20
        $region19: #{net_forward.3} parent=11 // pred_region
          _
        $region20: #{net_forward.3} parent=11 // pred_fallthru
          _
      $region12: #{net_forward.3} parent=5 // pred_fallthru
        _
      %p124 = scmp.lt.s32.totalorder %s9, 2
      // Predicated region
      $region21: #{net_forward.3} parent=5 // pred_check
        %p125 = pneg %p124
      $region22: #{net_forward.3} parent=5 // pred_check_branch
        %127 = sbr.rel (%p125) target = $region24
      $region23: #{net_forward.3} parent=5 // pred_region
        // Predicated region
        $region25: #{net_forward.3} parent=23 // pred_check
          %p128 = pneg %p71
        $region26: #{net_forward.3} parent=23 // pred_check_branch
          %130 = sbr.rel (%p128) target = $region28
        $region27: #{net_forward.3} parent=23 // pred_region
          %s131 = sand.u32 %s61, 1
          %s132 = sand.u32 %s61, 1
          %s133 = smul.addr %s132, 128
          %s134 = scalar_lea.vmem [#allocation2], %s133
          %s135 = smul.u32 2, %s9
          %s136 = smul.addr %s135, 4
          %s137 = scalar_lea.vmem %s2, %s136
          // Predicated region
          $region29: #{net_forward.3} parent=27 // pred_check
            _
          $region30: #{net_forward.3} parent=27 // pred_check_branch
            %139 = sbr.rel (0) target = $region32
          $region31: #{net_forward.3} parent=27 // pred_region
            // Predicated region
            $region33: #{net_forward.3} parent=31 // pred_check
              _
            $region34: #{net_forward.3} parent=31 // pred_check_branch
              %141 = sbr.rel (0) target = $region36
            $region35: #{net_forward.3} parent=31 // pred_region
              // Predicated region
              $region48: #{net_forward.3} parent=35 // pred_check
                _
              $region49: #{net_forward.3} parent=35 // pred_check_branch
                %187 = sbr.rel (0) target = $region51
              $region50: #{net_forward.3} parent=35 // pred_region
                loop: start=0, step=1, limit=1
                $region52: #{net_forward.3} parent=50 // loop_pre_header
                  _
                $region53: #{net_forward.3} parent=50 // loop_header
                  %s189 = sphi 0, %s193
                  %p190 = scmp.ge.s32.totalorder %s189, 1
                  %s194 = sphi %s137, %s137
                  %s195 = sphi %s134, %s134
                $region54: #{net_forward.3} parent=50 // loop_header_branch
                  %192 = sbr.rel (%p190) target = $region58
                $region55: #{net_forward.3} parent=50 // loop_body
                  %v196 = vld [vmem:[%s194] sm:$0xff]
                  %197 = vst [vmem:[%s195] sm:$0xff] %v196
                  %v198 = vld [vmem:[%s194 + $0x10] sm:$0xff]
                  %199 = vst [vmem:[%s195 + $0x8] sm:$0xff] %v198
                  %v200 = vld [vmem:[%s194 + $0x20] sm:$0xff]
                  %201 = vst [vmem:[%s195 + $0x10] sm:$0xff] %v200
                  %v202 = vld [vmem:[%s194 + $0x30] sm:$0xff]
                  %203 = vst [vmem:[%s195 + $0x18] sm:$0xff] %v202
                  %v204 = vld [vmem:[%s194 + $0x40] sm:$0xff]
                  %205 = vst [vmem:[%s195 + $0x20] sm:$0xff] %v204
                  %v206 = vld [vmem:[%s194 + $0x50] sm:$0xff]
                  %207 = vst [vmem:[%s195 + $0x28] sm:$0xff] %v206
                  %v208 = vld [vmem:[%s194 + $0x60] sm:$0xff]
                  %209 = vst [vmem:[%s195 + $0x30] sm:$0xff] %v208
                  %v210 = vld [vmem:[%s194 + $0x70] sm:$0xff]
                  %211 = vst [vmem:[%s195 + $0x38] sm:$0xff] %v210
                  %v212 = vld [vmem:[%s194 + $0x80] sm:$0xff]
                  %213 = vst [vmem:[%s195 + $0x40] sm:$0xff] %v212
                  %v214 = vld [vmem:[%s194 + $0x90] sm:$0xff]
                  %215 = vst [vmem:[%s195 + $0x48] sm:$0xff] %v214
                  %v216 = vld [vmem:[%s194 + $0xa0] sm:$0xff]
                  %217 = vst [vmem:[%s195 + $0x50] sm:$0xff] %v216
                  %v218 = vld [vmem:[%s194 + $0xb0] sm:$0xff]
                  %219 = vst [vmem:[%s195 + $0x58] sm:$0xff] %v218
                  %v220 = vld [vmem:[%s194 + $0xc0] sm:$0xff]
                  %221 = vst [vmem:[%s195 + $0x60] sm:$0xff] %v220
                  %v222 = vld [vmem:[%s194 + $0xd0] sm:$0xff]
                  %223 = vst [vmem:[%s195 + $0x68] sm:$0xff] %v222
                  %v224 = vld [vmem:[%s194 + $0xe0] sm:$0xff]
                  %225 = vst [vmem:[%s195 + $0x70] sm:$0xff] %v224
                  %v226 = vld [vmem:[%s194 + $0xf0] sm:$0xff]
                  %227 = vst [vmem:[%s195 + $0x78] sm:$0xff] %v226
                $region56: #{net_forward.3} parent=50 // loop_footer
                  %s193 = sadd.s32 1, %s189
                $region57: #{net_forward.3} parent=50 // loop_footer_branch
                  %188 = sbr.rel target = $region53
                $region58: #{net_forward.3} parent=50 // loop_exit
                  _
              $region51: #{net_forward.3} parent=35 // pred_fallthru
                _
              // Predicated region
              $region59: #{net_forward.3} parent=35 // pred_check
                _
              $region60: #{net_forward.3} parent=35 // pred_check_branch
                %229 = sbr.rel target = $region62
              $region61: #{net_forward.3} parent=35 // pred_region
                _
              $region62: #{net_forward.3} parent=35 // pred_fallthru
                _
            $region36: #{net_forward.3} parent=31 // pred_fallthru
              _
            // Predicated region
            $region37: #{net_forward.3} parent=31 // pred_check
              _
            $region38: #{net_forward.3} parent=31 // pred_check_branch
              %143 = sbr.rel target = $region40
            $region39: #{net_forward.3} parent=31 // pred_region
              %s145 = ssub.s32 256, 1
              loop: start=0, step=1, limit=1
              $region41: #{net_forward.3} parent=39 // loop_pre_header
                _
              $region42: #{net_forward.3} parent=39 // loop_header
                %s147 = sphi 0, %s151
                %p148 = scmp.ge.s32.totalorder %s147, 1
                %s152 = sphi %s137, %s137
                %s153 = sphi %s134, %s134
              $region43: #{net_forward.3} parent=39 // loop_header_branch
                %150 = sbr.rel (%p148) target = $region47
              $region44: #{net_forward.3} parent=39 // loop_body
                %v154 = vld [vmem:[%s152] sm:%s145]
                %155 = vst [vmem:[%s153] sm:%s145] %v154
                %v156 = vld [vmem:[%s152 + $0x10] sm:%s145]
                %157 = vst [vmem:[%s153 + $0x8] sm:%s145] %v156
                %v158 = vld [vmem:[%s152 + $0x20] sm:%s145]
                %159 = vst [vmem:[%s153 + $0x10] sm:%s145] %v158
                %v160 = vld [vmem:[%s152 + $0x30] sm:%s145]
                %161 = vst [vmem:[%s153 + $0x18] sm:%s145] %v160
                %v162 = vld [vmem:[%s152 + $0x40] sm:%s145]
                %163 = vst [vmem:[%s153 + $0x20] sm:%s145] %v162
                %v164 = vld [vmem:[%s152 + $0x50] sm:%s145]
                %165 = vst [vmem:[%s153 + $0x28] sm:%s145] %v164
                %v166 = vld [vmem:[%s152 + $0x60] sm:%s145]
                %167 = vst [vmem:[%s153 + $0x30] sm:%s145] %v166
                %v168 = vld [vmem:[%s152 + $0x70] sm:%s145]
                %169 = vst [vmem:[%s153 + $0x38] sm:%s145] %v168
                %v170 = vld [vmem:[%s152 + $0x80] sm:%s145]
                %171 = vst [vmem:[%s153 + $0x40] sm:%s145] %v170
                %v172 = vld [vmem:[%s152 + $0x90] sm:%s145]
                %173 = vst [vmem:[%s153 + $0x48] sm:%s145] %v172
                %v174 = vld [vmem:[%s152 + $0xa0] sm:%s145]
                %175 = vst [vmem:[%s153 + $0x50] sm:%s145] %v174
                %v176 = vld [vmem:[%s152 + $0xb0] sm:%s145]
                %177 = vst [vmem:[%s153 + $0x58] sm:%s145] %v176
                %v178 = vld [vmem:[%s152 + $0xc0] sm:%s145]
                %179 = vst [vmem:[%s153 + $0x60] sm:%s145] %v178
                %v180 = vld [vmem:[%s152 + $0xd0] sm:%s145]
                %181 = vst [vmem:[%s153 + $0x68] sm:%s145] %v180
                %v182 = vld [vmem:[%s152 + $0xe0] sm:%s145]
                %183 = vst [vmem:[%s153 + $0x70] sm:%s145] %v182
                %v184 = vld [vmem:[%s152 + $0xf0] sm:%s145]
                %185 = vst [vmem:[%s153 + $0x78] sm:%s145] %v184
              $region45: #{net_forward.3} parent=39 // loop_footer
                %s151 = sadd.s32 1, %s147
              $region46: #{net_forward.3} parent=39 // loop_footer_branch
                %146 = sbr.rel target = $region42
              $region47: #{net_forward.3} parent=39 // loop_exit
                _
            $region40: #{net_forward.3} parent=31 // pred_fallthru
              _
          $region32: #{net_forward.3} parent=27 // pred_fallthru
            _
          %230 = vnop
        $region28: #{net_forward.3} parent=23 // pred_fallthru
          _
      $region24: #{net_forward.3} parent=5 // pred_fallthru
        _
      %p231 = scmp.le.s32.totalorder 1, %s9
      %p232 = scmp.lt.s32.totalorder %s9, 3
      %p233 = pnand %p231, %p232
      %p234 = pneg %p233
      // Predicated region
      $region63: #{net_forward.3} parent=5 // pred_check
        _
      $region64: #{net_forward.3} parent=5 // pred_check_branch
        %236 = sbr.rel (%p233) target = $region66
      $region65: #{net_forward.3} parent=5 // pred_region
        %s237 = ssub.s32 %s9, 1
        %s238 = sand.u32 %s64, 1
        %s239 = sand.u32 %s64, 1
        %s240 = smul.addr %s239, 128
        %s241 = scalar_lea.vmem [#allocation2], %s240
        // Predicated region
        $region67: #{net_forward.3} parent=65 // pred_check
          %p242 = pneg %p77
        $region68: #{net_forward.3} parent=65 // pred_check_branch
          %244 = sbr.rel (%p242) target = $region70
        $region69: #{net_forward.3} parent=65 // pred_region
          _
        $region70: #{net_forward.3} parent=65 // pred_fallthru
          _
        %p245 = pneg %p30
        %p246 = pneg %p27
        %p247 = pneg %p51
        %p248 = pneg %p48
        %s249 = sand.u32 %s64, 1
        %s250 = sand.u32 %s64, 1
        %s251 = smul.addr %s250, 128
        %s252 = scalar_lea.vmem [#allocation2], %s251
        %p253 = pneg %p77
        %p254 = pneg %p74
        %p255 = pneg %p103
        %p256 = pneg %p100
        %s257 = smul.u32 2, %s14
        %p258 = scmp.lt.s32.totalorder %s257, 3
        %s259 = scalar_select %p258, %s257, 3
        %s260 = smul.addr %s259, 4
        %s261 = scalar_lea.vmem %s3, %s260
        %s262 = smul.u32 2, %s14
        %s263 = smul.u32 2, %s14
        %p264 = scmp.lt.s32.totalorder %s263, 3
        %s265 = scalar_select %p264, %s263, 3
        %s266 = smul.addr %s265, 4
        %s267 = scalar_lea.vmem %s3, %s266
        %s268 = smul.u32 2, %s14
        %v270 = vld [vmem:[%s0] sm:$0x7]
        %v271 = vld [vmem:[%s241] sm:$0xff]
        %v272 = vld [vmem:[%s241 + $0x8] sm:$0xff]
        %v273 = vld [vmem:[%s241 + $0x10] sm:$0xff]
        %v274 = vld [vmem:[%s241 + $0x18] sm:$0x11]
        %v279 = vunpack.c.l.b16 %v271
        %v280 = vunpack.c.h.b16 %v271
        %v281 = vunpack.c.l.b16 %v272
        %v282 = vunpack.c.h.b16 %v272
        %v283 = vunpack.c.l.b16 %v273
        %v284 = vunpack.c.h.b16 %v273
        %v285 = vunpack.c.l.b16 %v274
        %v286 = vunpack.c.h.b16 %v274
        %v287 = vpack.c.b16 %v281, %v279
        %v288 = vpack.c.b16 %v282, %v280
        %v289 = vpack.c.b16 %v285, %v283
        %v290 = vpack.c.b16 %v286, %v284
        %vm293 = vcmask 203776
        %v295 = vsel %vm293, %v270, 0
        %vm297 = vcmask 1043456
        %vm298 = vcmask 1044480
        %v299 = vsel %vm297, 4294967295, 65535
        %v300 = vsel %vm298, %v299, 0
        %v302 = vand.u32 %v289, %v300
        %v305 = vand.u32 %v290, %v300
        %307 = vmatpush.bf16.msra.mxu0 0
        %308 = vmatpush.bf16.msra.mxu0 0
        %309 = vmatpush.bf16.msra.mxu0 0
        %310 = vmatpush.bf16.msra.mxu0 0
        %311 = vmatpush.bf16.msra.mxu0 0
        %312 = vmatpush.bf16.msra.mxu0 0
        %313 = vmatpush.bf16.msra.mxu0 %v302
        %314 = vmatpush.bf16.msra.mxu0 %v287
        %315 = vmatmul.bf16.gmra.mxu0 %v295
        %v316 = vpop.f32.mrf.mxu0
        %v317 = vadd.f32 0.0, %v316
        %v318 = vpop.f32.mrf.mxu0
        %319 = vdwg.mxu0
        %320 = vmatpush.bf16.msra.mxu0 0
        %321 = vmatpush.bf16.msra.mxu0 0
        %322 = vmatpush.bf16.msra.mxu0 0
        %323 = vmatpush.bf16.msra.mxu0 0
        %324 = vmatpush.bf16.msra.mxu0 0
        %325 = vmatpush.bf16.msra.mxu0 0
        %326 = vmatpush.bf16.msra.mxu0 %v305
        %327 = vmatpush.bf16.msra.mxu0 %v288
        %328 = vmatmul.bf16.gmra.mxu0 %v295
        %v329 = vpop.f32.mrf.mxu0
        %v330 = vadd.f32 0.0, %v329
        %v331 = vpop.f32.mrf.mxu0
        %332 = vdwg.mxu0
        %s333 = scalar_lea.vmem %s241, 32 [#allocation2]
        %v334 = vld [vmem:[%s333] sm:$0xff]
        %v335 = vld [vmem:[%s333 + $0x8] sm:$0xff]
        %v336 = vld [vmem:[%s333 + $0x10] sm:$0xff]
        %v337 = vld [vmem:[%s333 + $0x18] sm:$0x11]
        %v342 = vunpack.c.l.b16 %v334
        %v343 = vunpack.c.h.b16 %v334
        %v344 = vunpack.c.l.b16 %v335
        %v345 = vunpack.c.h.b16 %v335
        %v346 = vunpack.c.l.b16 %v336
        %v347 = vunpack.c.h.b16 %v336
        %v348 = vunpack.c.l.b16 %v337
        %v349 = vunpack.c.h.b16 %v337
        %v350 = vpack.c.b16 %v344, %v342
        %v351 = vpack.c.b16 %v345, %v343
        %v352 = vpack.c.b16 %v348, %v346
        %v353 = vpack.c.b16 %v349, %v347
        %v357 = vand.u32 %v352, %v300
        %v360 = vand.u32 %v353, %v300
        %362 = vmatpush.bf16.msra.mxu0 0
        %363 = vmatpush.bf16.msra.mxu0 0
        %364 = vmatpush.bf16.msra.mxu0 0
        %365 = vmatpush.bf16.msra.mxu0 0
        %366 = vmatpush.bf16.msra.mxu0 0
        %367 = vmatpush.bf16.msra.mxu0 0
        %368 = vmatpush.bf16.msra.mxu0 %v357
        %369 = vmatpush.bf16.msra.mxu0 %v350
        %370 = vmatmul.bf16.gmra.mxu0 %v295
        %v371 = vpop.f32.mrf.mxu0
        %v372 = vadd.f32 0.0, %v371
        %v373 = vpop.f32.mrf.mxu0
        %374 = vdwg.mxu0
        %375 = vmatpush.bf16.msra.mxu0 0
        %376 = vmatpush.bf16.msra.mxu0 0
        %377 = vmatpush.bf16.msra.mxu0 0
        %378 = vmatpush.bf16.msra.mxu0 0
        %379 = vmatpush.bf16.msra.mxu0 0
        %380 = vmatpush.bf16.msra.mxu0 0
        %381 = vmatpush.bf16.msra.mxu0 %v360
        %382 = vmatpush.bf16.msra.mxu0 %v351
        %383 = vmatmul.bf16.gmra.mxu0 %v295
        %v384 = vpop.f32.mrf.mxu0
        %v385 = vadd.f32 0.0, %v384
        %v386 = vpop.f32.mrf.mxu0
        %387 = vdwg.mxu0
        %v388 = vmax.f32 %v317, %v372
        %v389 = vmax.f32 %v330, %v385
        %s390 = scalar_lea.vmem %s241, 64 [#allocation2]
        %v391 = vld [vmem:[%s390] sm:$0xff]
        %v392 = vld [vmem:[%s390 + $0x8] sm:$0xff]
        %v393 = vld [vmem:[%s390 + $0x10] sm:$0xff]
        %v394 = vld [vmem:[%s390 + $0x18] sm:$0x11]
        %v399 = vunpack.c.l.b16 %v391
        %v400 = vunpack.c.h.b16 %v391
        %v401 = vunpack.c.l.b16 %v392
        %v402 = vunpack.c.h.b16 %v392
        %v403 = vunpack.c.l.b16 %v393
        %v404 = vunpack.c.h.b16 %v393
        %v405 = vunpack.c.l.b16 %v394
        %v406 = vunpack.c.h.b16 %v394
        %v407 = vpack.c.b16 %v401, %v399
        %v408 = vpack.c.b16 %v402, %v400
        %v409 = vpack.c.b16 %v405, %v403
        %v410 = vpack.c.b16 %v406, %v404
        %v414 = vand.u32 %v409, %v300
        %v417 = vand.u32 %v410, %v300
        %419 = vmatpush.bf16.msra.mxu0 0
        %420 = vmatpush.bf16.msra.mxu0 0
        %421 = vmatpush.bf16.msra.mxu0 0
        %422 = vmatpush.bf16.msra.mxu0 0
        %423 = vmatpush.bf16.msra.mxu0 0
        %424 = vmatpush.bf16.msra.mxu0 0
        %425 = vmatpush.bf16.msra.mxu0 %v414
        %426 = vmatpush.bf16.msra.mxu0 %v407
        %427 = vmatmul.bf16.gmra.mxu0 %v295
        %v428 = vpop.f32.mrf.mxu0
        %v429 = vadd.f32 0.0, %v428
        %v430 = vpop.f32.mrf.mxu0
        %431 = vdwg.mxu0
        %432 = vmatpush.bf16.msra.mxu0 0
        %433 = vmatpush.bf16.msra.mxu0 0
        %434 = vmatpush.bf16.msra.mxu0 0
        %435 = vmatpush.bf16.msra.mxu0 0
        %436 = vmatpush.bf16.msra.mxu0 0
        %437 = vmatpush.bf16.msra.mxu0 0
        %438 = vmatpush.bf16.msra.mxu0 %v417
        %439 = vmatpush.bf16.msra.mxu0 %v408
        %440 = vmatmul.bf16.gmra.mxu0 %v295
        %v441 = vpop.f32.mrf.mxu0
        %v442 = vadd.f32 0.0, %v441
        %v443 = vpop.f32.mrf.mxu0
        %444 = vdwg.mxu0
        %v445 = vmax.f32 %v388, %v429
        %v446 = vmax.f32 %v389, %v442
        %s447 = scalar_lea.vmem %s241, 96 [#allocation2]
        %v448 = vld [vmem:[%s447] sm:$0xff]
        %v449 = vld [vmem:[%s447 + $0x8] sm:$0xff]
        %v450 = vld [vmem:[%s447 + $0x10] sm:$0xff]
        %v451 = vld [vmem:[%s447 + $0x18] sm:$0x11]
        %v456 = vunpack.c.l.b16 %v448
        %v457 = vunpack.c.h.b16 %v448
        %v458 = vunpack.c.l.b16 %v449
        %v459 = vunpack.c.h.b16 %v449
        %v460 = vunpack.c.l.b16 %v450
        %v461 = vunpack.c.h.b16 %v450
        %v462 = vunpack.c.l.b16 %v451
        %v463 = vunpack.c.h.b16 %v451
        %v464 = vpack.c.b16 %v458, %v456
        %v465 = vpack.c.b16 %v459, %v457
        %v466 = vpack.c.b16 %v462, %v460
        %v467 = vpack.c.b16 %v463, %v461
        %v471 = vand.u32 %v466, %v300
        %v474 = vand.u32 %v467, %v300
        %476 = vmatpush.bf16.msra.mxu0 0
        %477 = vmatpush.bf16.msra.mxu0 0
        %478 = vmatpush.bf16.msra.mxu0 0
        %479 = vmatpush.bf16.msra.mxu0 0
        %480 = vmatpush.bf16.msra.mxu0 0
        %481 = vmatpush.bf16.msra.mxu0 0
        %482 = vmatpush.bf16.msra.mxu0 %v471
        %483 = vmatpush.bf16.msra.mxu0 %v464
        %484 = vmatmul.bf16.gmra.mxu0 %v295
        %v485 = vpop.f32.mrf.mxu0
        %v486 = vadd.f32 0.0, %v485
        %v487 = vpop.f32.mrf.mxu0
        %488 = vdwg.mxu0
        %489 = vmatpush.bf16.msra.mxu0 0
        %490 = vmatpush.bf16.msra.mxu0 0
        %491 = vmatpush.bf16.msra.mxu0 0
        %492 = vmatpush.bf16.msra.mxu0 0
        %493 = vmatpush.bf16.msra.mxu0 0
        %494 = vmatpush.bf16.msra.mxu0 0
        %495 = vmatpush.bf16.msra.mxu0 %v474
        %496 = vmatpush.bf16.msra.mxu0 %v465
        %497 = vmatmul.bf16.gmra.mxu0 %v295
        %v498 = vpop.f32.mrf.mxu0
        %v499 = vadd.f32 0.0, %v498
        %v500 = vpop.f32.mrf.mxu0
        %501 = vdwg.mxu0
        %v502 = vmax.f32 %v445, %v486
        %v503 = vmax.f32 %v446, %v499
        %v504 = vld [vmem:[%s1] sm:$0x3f]
        %506 = vset.pattern.permute.xlu0 0
        %507 = vperm.xlu0 %506, %v504
        %v508 = vpop.permute.xlu0 %507
        %v510 = vadd.f32 %v502, %v508
        %v511 = vadd.f32 %v503, %v508
        %v512 = vmax.f32 %v510, 0.0
        %v513 = vmax.f32 %v511, 0.0
        %v514 = vpack.c.bf16 %v513, %v512
        %515 = vst [vmem:[%s267] sm:$0x77] %v514
        %s516 = smul.u32 2, %s14
        %p517 = scmp.lt.s32.totalorder %s516, 3
        %s518 = scalar_select %p517, %s516, 3
        %s519 = smul.addr %s518, 4
        %s520 = scalar_lea.vmem %s3, %s519
        // Predicated region
        $region71: #{net_forward.3} parent=65 // pred_check
          %p521 = pneg %p100
        $region72: #{net_forward.3} parent=65 // pred_check_branch
          %523 = sbr.rel (%p521) target = $region74
        $region73: #{net_forward.3} parent=65 // pred_region
          %s524 = smul.u32 2, %s14
        $region74: #{net_forward.3} parent=65 // pred_fallthru
          _
      $region66: #{net_forward.3} parent=5 // pred_fallthru
        _
      %p525 = scmp.le.s32.totalorder 2, %s9
      // Predicated region
      $region75: #{net_forward.3} parent=5 // pred_check
        %p526 = pneg %p525
      $region76: #{net_forward.3} parent=5 // pred_check_branch
        %528 = sbr.rel (%p526) target = $region78
      $region77: #{net_forward.3} parent=5 // pred_region
        %s529 = ssub.s32 %s9, 2
        // Predicated region
        $region79: #{net_forward.3} parent=77 // pred_check
          %p530 = pneg %p106
        $region80: #{net_forward.3} parent=77 // pred_check_branch
          %532 = sbr.rel (%p530) target = $region82
        $region81: #{net_forward.3} parent=77 // pred_region
          %s533 = smul.u32 2, %s15
          %p534 = scmp.lt.s32.totalorder %s533, 3
          %s535 = scalar_select %p534, %s533, 3
          %s536 = smul.addr %s535, 4
          %s537 = scalar_lea.vmem %s3, %s536
        $region82: #{net_forward.3} parent=77 // pred_fallthru
          _
      $region78: #{net_forward.3} parent=5 // pred_fallthru
        _
    $region6: #{net_forward.3} parent=1 // loop_footer
      %s13 = sadd.s32 1, %s9
    $region7: #{net_forward.3} parent=1 // loop_footer_branch
      %8 = sbr.rel target = $region3
    $region8: #{net_forward.3} parent=1 // loop_exit
      _

// kernel: net_forward.4
$region0: #{net_forward.4}
  #allocation0 [shape = 'u32[]', space=smem, size = 0x4, offset = 0x4, fixed_abs, tag = 'smem constant byte address 0x4 - core index']
  #allocation1 [shape = 'u32[72,128]{1,0:T(1,128)}', space=vmem, size = 0x9000, scoped, tag = 'internal scratch']
  %s0 = inlined_call_operand.vmem [shape: bf16[16,150], index: 0, kind: input, shape index: {}]
  %s1 = inlined_call_operand.vmem [shape: f32[16,1], index: 1, kind: input, shape index: {}]
  %s2 = inlined_call_operand.vmem [shape: bf16[4,150,128], index: 2, kind: input, shape index: {}]
  %s3 = inlined_call_operand.vmem [shape: bf16[16,128], index: 3, kind: output, shape index: {}]
  %s4 = sld [smem:[#allocation0]]
  $region22: #{net_forward.4} parent=0
    _
  %s6 = ssub.s32 1, %s4
  %s7 = scalar_select 0, %s6, %s4
  // Predicated region
  $region2: #{net_forward.4} parent=0 // pred_check
    _
  $region3: #{net_forward.4} parent=0 // pred_check_branch
    %9 = sbr.rel (0) target = $region5
  $region4: #{net_forward.4} parent=0 // pred_region
    _
  $region5: #{net_forward.4} parent=0 // pred_fallthru
    _
  // Predicated region
  $region6: #{net_forward.4} parent=0 // pred_check
    _
  $region7: #{net_forward.4} parent=0 // pred_check_branch
    %11 = sbr.rel (0) target = $region9
  $region8: #{net_forward.4} parent=0 // pred_region
    _
  $region9: #{net_forward.4} parent=0 // pred_fallthru
    _
  // Predicated region
  $region10: #{net_forward.4} parent=0 // pred_check
    _
  $region11: #{net_forward.4} parent=0 // pred_check_branch
    %13 = sbr.rel (0) target = $region13
  $region12: #{net_forward.4} parent=0 // pred_region
    _
  $region13: #{net_forward.4} parent=0 // pred_fallthru
    _
  %v15 = vld [vmem:[%s0] sm:$0xff]
  %v16 = vld [vmem:[%s0 + $0x8] sm:$0xff]
  %v17 = vld [vmem:[%s2] sm:$0xf]
  %v18 = vld [vmem:[%s2 + $0x4] sm:$0xf]
  %v19 = vld [vmem:[%s2 + $0x8] sm:$0xf]
  %v20 = vld [vmem:[%s2 + $0xc] sm:$0xf]
  %v21 = vld [vmem:[%s2 + $0x10] sm:$0xf]
  %v22 = vld [vmem:[%s2 + $0x14] sm:$0xf]
  %v23 = vld [vmem:[%s2 + $0x18] sm:$0xf]
  %v24 = vld [vmem:[%s2 + $0x1c] sm:$0xf]
  %v25 = vld [vmem:[%s2 + $0x20] sm:$0xf]
  %v26 = vld [vmem:[%s2 + $0x24] sm:$0xf]
  %v27 = vld [vmem:[%s2 + $0x28] sm:$0xf]
  %v28 = vld [vmem:[%s2 + $0x2c] sm:$0xf]
  %v29 = vld [vmem:[%s2 + $0x30] sm:$0xf]
  %v30 = vld [vmem:[%s2 + $0x34] sm:$0xf]
  %v31 = vld [vmem:[%s2 + $0x38] sm:$0xf]
  %v32 = vld [vmem:[%s2 + $0x3c] sm:$0xf]
  %v33 = vld [vmem:[%s2 + $0x40] sm:$0xf]
  %v34 = vld [vmem:[%s2 + $0x44] sm:$0xf]
  %v35 = vld [vmem:[%s2 + $0x48] sm:$0x7]
  %v38 = vunpack.c.l.b16 %v15
  %v39 = vunpack.c.h.b16 %v15
  %v40 = vunpack.c.l.b16 %v16
  %v41 = vunpack.c.h.b16 %v16
  %v42 = vpack.c.b16 %v40, %v38
  %v43 = vpack.c.b16 %v41, %v39
  %v64 = vunpack.c.l.b16 %v17
  %v65 = vunpack.c.l.b16 %v18
  %v66 = vunpack.c.l.b16 %v19
  %v67 = vunpack.c.l.b16 %v20
  %v68 = vunpack.c.l.b16 %v21
  %v69 = vunpack.c.l.b16 %v22
  %v70 = vunpack.c.l.b16 %v23
  %v71 = vunpack.c.l.b16 %v24
  %v72 = vunpack.c.l.b16 %v25
  %v73 = vunpack.c.l.b16 %v26
  %v74 = vunpack.c.l.b16 %v27
  %v75 = vunpack.c.l.b16 %v28
  %v76 = vunpack.c.l.b16 %v29
  %v77 = vunpack.c.l.b16 %v30
  %v78 = vunpack.c.l.b16 %v31
  %v79 = vunpack.c.l.b16 %v32
  %v80 = vunpack.c.l.b16 %v33
  %v81 = vunpack.c.l.b16 %v34
  %v82 = vunpack.c.l.b16 %v35
  %v83 = vpack.c.b16 %v65, %v64
  %v84 = vpack.c.b16 %v67, %v66
  %v85 = vpack.c.b16 %v69, %v68
  %v86 = vpack.c.b16 %v71, %v70
  %v87 = vpack.c.b16 %v73, %v72
  %v88 = vpack.c.b16 %v75, %v74
  %v89 = vpack.c.b16 %v77, %v76
  %v90 = vpack.c.b16 %v79, %v78
  %v91 = vpack.c.b16 %v81, %v80
  %v92 = vpack.c.b16 %v82, %v82
  %vm102 = vcmask 179200
  %v104 = vsel %vm102, %v43, 0
  %vm106 = vcmask 1042432
  %v108 = vsel %vm106, %v92, 0
  %110 = vmatpush.bf16.msra.mxu0 %v90
  %111 = vmatpush.bf16.msra.mxu0 %v89
  %112 = vmatpush.bf16.msra.mxu0 %v88
  %113 = vmatpush.bf16.msra.mxu0 %v87
  %114 = vmatpush.bf16.msra.mxu0 %v86
  %115 = vmatpush.bf16.msra.mxu0 %v85
  %116 = vmatpush.bf16.msra.mxu0 %v84
  %117 = vmatpush.bf16.msra.mxu0 %v83
  %118 = vmatmul.bf16.gmra.mxu0 %v42
  %v119 = vpop.f32.mrf.mxu0
  %v120 = vadd.f32 0.0, %v119
  %v121 = vpop.f32.mrf.mxu0
  %v122 = vadd.f32 0.0, %v121
  %123 = vdwg.mxu0
  %124 = vmatpush.bf16.msra.mxu0 0
  %125 = vmatpush.bf16.msra.mxu0 0
  %126 = vmatpush.bf16.msra.mxu0 0
  %127 = vmatpush.bf16.msra.mxu0 0
  %128 = vmatpush.bf16.msra.mxu0 0
  %129 = vmatpush.bf16.msra.mxu0 0
  %130 = vmatpush.bf16.msra.mxu0 %v108
  %131 = vmatpush.bf16.msra.mxu0 %v91
  %132 = vmatmul.bf16.gmra.mxu0 %v104
  %v133 = vpop.f32.mrf.mxu0
  %v134 = vadd.f32 %v120, %v133
  %v135 = vpop.f32.mrf.mxu0
  %v136 = vadd.f32 %v122, %v135
  %137 = vdwg.mxu0
  %s138 = scalar_lea.vmem %s2, 76
  %v139 = vld [vmem:[%s138] sm:$0xf]
  %v140 = vld [vmem:[%s138 + $0x4] sm:$0xf]
  %v141 = vld [vmem:[%s138 + $0x8] sm:$0xf]
  %v142 = vld [vmem:[%s138 + $0xc] sm:$0xf]
  %v143 = vld [vmem:[%s138 + $0x10] sm:$0xf]
  %v144 = vld [vmem:[%s138 + $0x14] sm:$0xf]
  %v145 = vld [vmem:[%s138 + $0x18] sm:$0xf]
  %v146 = vld [vmem:[%s138 + $0x1c] sm:$0xf]
  %v147 = vld [vmem:[%s138 + $0x20] sm:$0xf]
  %v148 = vld [vmem:[%s138 + $0x24] sm:$0xf]
  %v149 = vld [vmem:[%s138 + $0x28] sm:$0xf]
  %v150 = vld [vmem:[%s138 + $0x2c] sm:$0xf]
  %v151 = vld [vmem:[%s138 + $0x30] sm:$0xf]
  %v152 = vld [vmem:[%s138 + $0x34] sm:$0xf]
  %v153 = vld [vmem:[%s138 + $0x38] sm:$0xf]
  %v154 = vld [vmem:[%s138 + $0x3c] sm:$0xf]
  %v155 = vld [vmem:[%s138 + $0x40] sm:$0xf]
  %v156 = vld [vmem:[%s138 + $0x44] sm:$0xf]
  %v157 = vld [vmem:[%s138 + $0x48] sm:$0x7]
  %v177 = vunpack.c.l.b16 %v139
  %v178 = vunpack.c.l.b16 %v140
  %v179 = vunpack.c.l.b16 %v141
  %v180 = vunpack.c.l.b16 %v142
  %v181 = vunpack.c.l.b16 %v143
  %v182 = vunpack.c.l.b16 %v144
  %v183 = vunpack.c.l.b16 %v145
  %v184 = vunpack.c.l.b16 %v146
  %v185 = vunpack.c.l.b16 %v147
  %v186 = vunpack.c.l.b16 %v148
  %v187 = vunpack.c.l.b16 %v149
  %v188 = vunpack.c.l.b16 %v150
  %v189 = vunpack.c.l.b16 %v151
  %v190 = vunpack.c.l.b16 %v152
  %v191 = vunpack.c.l.b16 %v153
  %v192 = vunpack.c.l.b16 %v154
  %v193 = vunpack.c.l.b16 %v155
  %v194 = vunpack.c.l.b16 %v156
  %v195 = vunpack.c.l.b16 %v157
  %v196 = vpack.c.b16 %v178, %v177
  %v197 = vpack.c.b16 %v180, %v179
  %v198 = vpack.c.b16 %v182, %v181
  %v199 = vpack.c.b16 %v184, %v183
  %v200 = vpack.c.b16 %v186, %v185
  %v201 = vpack.c.b16 %v188, %v187
  %v202 = vpack.c.b16 %v190, %v189
  %v203 = vpack.c.b16 %v192, %v191
  %v204 = vpack.c.b16 %v194, %v193
  %v205 = vpack.c.b16 %v195, %v195
  %v216 = vsel %vm106, %v205, 0
  %218 = vmatpush.bf16.msra.mxu0 %v203
  %219 = vmatpush.bf16.msra.mxu0 %v202
  %220 = vmatpush.bf16.msra.mxu0 %v201
  %221 = vmatpush.bf16.msra.mxu0 %v200
  %222 = vmatpush.bf16.msra.mxu0 %v199
  %223 = vmatpush.bf16.msra.mxu0 %v198
  %224 = vmatpush.bf16.msra.mxu0 %v197
  %225 = vmatpush.bf16.msra.mxu0 %v196
  %226 = vmatmul.bf16.gmra.mxu0 %v42
  %v227 = vpop.f32.mrf.mxu0
  %v228 = vadd.f32 0.0, %v227
  %v229 = vpop.f32.mrf.mxu0
  %v230 = vadd.f32 0.0, %v229
  %231 = vdwg.mxu0
  %232 = vmatpush.bf16.msra.mxu0 0
  %233 = vmatpush.bf16.msra.mxu0 0
  %234 = vmatpush.bf16.msra.mxu0 0
  %235 = vmatpush.bf16.msra.mxu0 0
  %236 = vmatpush.bf16.msra.mxu0 0
  %237 = vmatpush.bf16.msra.mxu0 0
  %238 = vmatpush.bf16.msra.mxu0 %v216
  %239 = vmatpush.bf16.msra.mxu0 %v204
  %240 = vmatmul.bf16.gmra.mxu0 %v104
  %v241 = vpop.f32.mrf.mxu0
  %v242 = vadd.f32 %v228, %v241
  %v243 = vpop.f32.mrf.mxu0
  %v244 = vadd.f32 %v230, %v243
  %245 = vdwg.mxu0
  %v246 = vmax.f32 %v134, %v242
  %v247 = vmax.f32 %v136, %v244
  %s248 = scalar_lea.vmem %s2, 152
  %v249 = vld [vmem:[%s248] sm:$0xf]
  %v250 = vld [vmem:[%s248 + $0x4] sm:$0xf]
  %v251 = vld [vmem:[%s248 + $0x8] sm:$0xf]
  %v252 = vld [vmem:[%s248 + $0xc] sm:$0xf]
  %v253 = vld [vmem:[%s248 + $0x10] sm:$0xf]
  %v254 = vld [vmem:[%s248 + $0x14] sm:$0xf]
  %v255 = vld [vmem:[%s248 + $0x18] sm:$0xf]
  %v256 = vld [vmem:[%s248 + $0x1c] sm:$0xf]
  %v257 = vld [vmem:[%s248 + $0x20] sm:$0xf]
  %v258 = vld [vmem:[%s248 + $0x24] sm:$0xf]
  %v259 = vld [vmem:[%s248 + $0x28] sm:$0xf]
  %v260 = vld [vmem:[%s248 + $0x2c] sm:$0xf]
  %v261 = vld [vmem:[%s248 + $0x30] sm:$0xf]
  %v262 = vld [vmem:[%s248 + $0x34] sm:$0xf]
  %v263 = vld [vmem:[%s248 + $0x38] sm:$0xf]
  %v264 = vld [vmem:[%s248 + $0x3c] sm:$0xf]
  %v265 = vld [vmem:[%s248 + $0x40] sm:$0xf]
  %v266 = vld [vmem:[%s248 + $0x44] sm:$0xf]
  %v267 = vld [vmem:[%s248 + $0x48] sm:$0x7]
  %v287 = vunpack.c.l.b16 %v249
  %v288 = vunpack.c.l.b16 %v250
  %v289 = vunpack.c.l.b16 %v251
  %v290 = vunpack.c.l.b16 %v252
  %v291 = vunpack.c.l.b16 %v253
  %v292 = vunpack.c.l.b16 %v254
  %v293 = vunpack.c.l.b16 %v255
  %v294 = vunpack.c.l.b16 %v256
  %v295 = vunpack.c.l.b16 %v257
  %v296 = vunpack.c.l.b16 %v258
  %v297 = vunpack.c.l.b16 %v259
  %v298 = vunpack.c.l.b16 %v260
  %v299 = vunpack.c.l.b16 %v261
  %v300 = vunpack.c.l.b16 %v262
  %v301 = vunpack.c.l.b16 %v263
  %v302 = vunpack.c.l.b16 %v264
  %v303 = vunpack.c.l.b16 %v265
  %v304 = vunpack.c.l.b16 %v266
  %v305 = vunpack.c.l.b16 %v267
  %v306 = vpack.c.b16 %v288, %v287
  %v307 = vpack.c.b16 %v290, %v289
  %v308 = vpack.c.b16 %v292, %v291
  %v309 = vpack.c.b16 %v294, %v293
  %v310 = vpack.c.b16 %v296, %v295
  %v311 = vpack.c.b16 %v298, %v297
  %v312 = vpack.c.b16 %v300, %v299
  %v313 = vpack.c.b16 %v302, %v301
  %v314 = vpack.c.b16 %v304, %v303
  %v315 = vpack.c.b16 %v305, %v305
  %v326 = vsel %vm106, %v315, 0
  %328 = vmatpush.bf16.msra.mxu0 %v313
  %329 = vmatpush.bf16.msra.mxu0 %v312
  %330 = vmatpush.bf16.msra.mxu0 %v311
  %331 = vmatpush.bf16.msra.mxu0 %v310
  %332 = vmatpush.bf16.msra.mxu0 %v309
  %333 = vmatpush.bf16.msra.mxu0 %v308
  %334 = vmatpush.bf16.msra.mxu0 %v307
  %335 = vmatpush.bf16.msra.mxu0 %v306
  %336 = vmatmul.bf16.gmra.mxu0 %v42
  %v337 = vpop.f32.mrf.mxu0
  %v338 = vadd.f32 0.0, %v337
  %v339 = vpop.f32.mrf.mxu0
  %v340 = vadd.f32 0.0, %v339
  %341 = vdwg.mxu0
  %342 = vmatpush.bf16.msra.mxu0 0
  %343 = vmatpush.bf16.msra.mxu0 0
  %344 = vmatpush.bf16.msra.mxu0 0
  %345 = vmatpush.bf16.msra.mxu0 0
  %346 = vmatpush.bf16.msra.mxu0 0
  %347 = vmatpush.bf16.msra.mxu0 0
  %348 = vmatpush.bf16.msra.mxu0 %v326
  %349 = vmatpush.bf16.msra.mxu0 %v314
  %350 = vmatmul.bf16.gmra.mxu0 %v104
  %v351 = vpop.f32.mrf.mxu0
  %v352 = vadd.f32 %v338, %v351
  %v353 = vpop.f32.mrf.mxu0
  %v354 = vadd.f32 %v340, %v353
  %355 = vdwg.mxu0
  %v356 = vmax.f32 %v246, %v352
  %v357 = vmax.f32 %v247, %v354
  %s358 = scalar_lea.vmem %s2, 228
  %v359 = vld [vmem:[%s358] sm:$0xf]
  %v360 = vld [vmem:[%s358 + $0x4] sm:$0xf]
  %v361 = vld [vmem:[%s358 + $0x8] sm:$0xf]
  %v362 = vld [vmem:[%s358 + $0xc] sm:$0xf]
  %v363 = vld [vmem:[%s358 + $0x10] sm:$0xf]
  %v364 = vld [vmem:[%s358 + $0x14] sm:$0xf]
  %v365 = vld [vmem:[%s358 + $0x18] sm:$0xf]
  %v366 = vld [vmem:[%s358 + $0x1c] sm:$0xf]
  %v367 = vld [vmem:[%s358 + $0x20] sm:$0xf]
  %v368 = vld [vmem:[%s358 + $0x24] sm:$0xf]
  %v369 = vld [vmem:[%s358 + $0x28] sm:$0xf]
  %v370 = vld [vmem:[%s358 + $0x2c] sm:$0xf]
  %v371 = vld [vmem:[%s358 + $0x30] sm:$0xf]
  %v372 = vld [vmem:[%s358 + $0x34] sm:$0xf]
  %v373 = vld [vmem:[%s358 + $0x38] sm:$0xf]
  %v374 = vld [vmem:[%s358 + $0x3c] sm:$0xf]
  %v375 = vld [vmem:[%s358 + $0x40] sm:$0xf]
  %v376 = vld [vmem:[%s358 + $0x44] sm:$0xf]
  %v377 = vld [vmem:[%s358 + $0x48] sm:$0x7]
  %v397 = vunpack.c.l.b16 %v359
  %v398 = vunpack.c.l.b16 %v360
  %v399 = vunpack.c.l.b16 %v361
  %v400 = vunpack.c.l.b16 %v362
  %v401 = vunpack.c.l.b16 %v363
  %v402 = vunpack.c.l.b16 %v364
  %v403 = vunpack.c.l.b16 %v365
  %v404 = vunpack.c.l.b16 %v366
  %v405 = vunpack.c.l.b16 %v367
  %v406 = vunpack.c.l.b16 %v368
  %v407 = vunpack.c.l.b16 %v369
  %v408 = vunpack.c.l.b16 %v370
  %v409 = vunpack.c.l.b16 %v371
  %v410 = vunpack.c.l.b16 %v372
  %v411 = vunpack.c.l.b16 %v373
  %v412 = vunpack.c.l.b16 %v374
  %v413 = vunpack.c.l.b16 %v375
  %v414 = vunpack.c.l.b16 %v376
  %v415 = vunpack.c.l.b16 %v377
  %v416 = vpack.c.b16 %v398, %v397
  %v417 = vpack.c.b16 %v400, %v399
  %v418 = vpack.c.b16 %v402, %v401
  %v419 = vpack.c.b16 %v404, %v403
  %v420 = vpack.c.b16 %v406, %v405
  %v421 = vpack.c.b16 %v408, %v407
  %v422 = vpack.c.b16 %v410, %v409
  %v423 = vpack.c.b16 %v412, %v411
  %v424 = vpack.c.b16 %v414, %v413
  %v425 = vpack.c.b16 %v415, %v415
  %v436 = vsel %vm106, %v425, 0
  %438 = vmatpush.bf16.msra.mxu0 %v423
  %439 = vmatpush.bf16.msra.mxu0 %v422
  %440 = vmatpush.bf16.msra.mxu0 %v421
  %441 = vmatpush.bf16.msra.mxu0 %v420
  %442 = vmatpush.bf16.msra.mxu0 %v419
  %443 = vmatpush.bf16.msra.mxu0 %v418
  %444 = vmatpush.bf16.msra.mxu0 %v417
  %445 = vmatpush.bf16.msra.mxu0 %v416
  %446 = vmatmul.bf16.gmra.mxu0 %v42
  %v447 = vpop.f32.mrf.mxu0
  %v448 = vadd.f32 0.0, %v447
  %v449 = vpop.f32.mrf.mxu0
  %v450 = vadd.f32 0.0, %v449
  %451 = vdwg.mxu0
  %452 = vmatpush.bf16.msra.mxu0 0
  %453 = vmatpush.bf16.msra.mxu0 0
  %454 = vmatpush.bf16.msra.mxu0 0
  %455 = vmatpush.bf16.msra.mxu0 0
  %456 = vmatpush.bf16.msra.mxu0 0
  %457 = vmatpush.bf16.msra.mxu0 0
  %458 = vmatpush.bf16.msra.mxu0 %v436
  %459 = vmatpush.bf16.msra.mxu0 %v424
  %460 = vmatmul.bf16.gmra.mxu0 %v104
  %v461 = vpop.f32.mrf.mxu0
  %v462 = vadd.f32 %v448, %v461
  %v463 = vpop.f32.mrf.mxu0
  %v464 = vadd.f32 %v450, %v463
  %465 = vdwg.mxu0
  %v466 = vmax.f32 %v356, %v462
  %v467 = vmax.f32 %v357, %v464
  %v468 = vld [vmem:[%s1] sm:$0xff]
  %v469 = vld [vmem:[%s1 + $0x8] sm:$0xff]
  %471 = vset.pattern.permute.xlu0 0
  %472 = vperm.xlu0 %471, %v468
  %v473 = vpop.permute.xlu0 %472
  %476 = vset.pattern.permute.xlu0 0
  %477 = vperm.xlu0 %476, %v469
  %v478 = vpop.permute.xlu0 %477
  %v480 = vadd.f32 %v466, %v473
  %v481 = vadd.f32 %v467, %v478
  %v482 = vmax.f32 %v480, 0.0
  %v483 = vmax.f32 %v481, 0.0
  %v484 = vpack.c.bf16 %v482, %v482
  %v485 = vpack.c.bf16 %v483, %v483
  %486 = vst [vmem:[%s3] sm:$0xf] %v484
  %487 = vst [vmem:[%s3 + $0x4] sm:$0xf] %v485
  // Predicated region
  $region14: #{net_forward.4} parent=0 // pred_check
    _
  $region15: #{net_forward.4} parent=0 // pred_check_branch
    %489 = sbr.rel (0) target = $region17
  $region16: #{net_forward.4} parent=0 // pred_region
    _
  $region17: #{net_forward.4} parent=0 // pred_fallthru
    _
  // Predicated region
  $region18: #{net_forward.4} parent=0 // pred_check
    _
  $region19: #{net_forward.4} parent=0 // pred_check_branch
    %491 = sbr.rel (0) target = $region21
  $region20: #{net_forward.4} parent=0 // pred_region
    _
  $region21: #{net_forward.4} parent=0 // pred_fallthru
    _

// kernel: net_forward.5
$region0: #{net_forward.5}
  #allocation0 [shape = 'u32[]', space=smem, size = 0x4, offset = 0x4, fixed_abs, tag = 'smem constant byte address 0x4 - core index']
  #allocation1 [shape = 'u32[72,128]{1,0:T(1,128)}', space=vmem, size = 0x9000, scoped, tag = 'internal scratch']
  %s0 = inlined_call_operand.vmem [shape: bf16[2,400], index: 0, kind: input, shape index: {}]
  %s1 = inlined_call_operand.vmem [shape: bf16[400,128], index: 1, kind: input, shape index: {}]
  %s2 = inlined_call_operand.vmem [shape: f32[1,128], index: 2, kind: input, shape index: {}]
  %s3 = inlined_call_operand.vmem [shape: bf16[128,128], index: 3, kind: input, shape index: {}]
  %s4 = inlined_call_operand.vmem [shape: f32[1,128], index: 4, kind: input, shape index: {}]
  %s5 = inlined_call_operand.vmem [shape: bf16[128,128], index: 5, kind: input, shape index: {}]
  %s6 = inlined_call_operand.vmem [shape: f32[1,128], index: 6, kind: input, shape index: {}]
  %s7 = inlined_call_operand.hbm [shape: f32[2,128], index: 7, kind: output, shape index: {}]
  %s8 = sld [smem:[#allocation0]]
  $region38: #{net_forward.5} parent=0
    _
  %s10 = ssub.s32 1, %s8
  %s11 = scalar_select 0, %s10, %s8
  $region1: #{net_forward.5} parent=0
    #allocation2 [shape = 'u8[1024]{0}', space=vmem, size = 0x400, scoped, tag = 'output window, operand 0, single buffered']
    #allocation3 [shape = 's32[1]{0}', space=sflag, size = 0x4, scoped, tag = 'scoped memory for net_forward.5']
    %12 = vsyncpa [#allocation3], 0
    // Predicated region
    $region2: #{net_forward.5} parent=1 // pred_check
      _
    $region3: #{net_forward.5} parent=1 // pred_check_branch
      %14 = sbr.rel (0) target = $region5
    $region4: #{net_forward.5} parent=1 // pred_region
      _
    $region5: #{net_forward.5} parent=1 // pred_fallthru
      _
    // Predicated region
    $region6: #{net_forward.5} parent=1 // pred_check
      _
    $region7: #{net_forward.5} parent=1 // pred_check_branch
      %16 = sbr.rel (0) target = $region9
    $region8: #{net_forward.5} parent=1 // pred_region
      _
    $region9: #{net_forward.5} parent=1 // pred_fallthru
      _
    // Predicated region
    $region10: #{net_forward.5} parent=1 // pred_check
      _
    $region11: #{net_forward.5} parent=1 // pred_check_branch
      %18 = sbr.rel (0) target = $region13
    $region12: #{net_forward.5} parent=1 // pred_region
      _
    $region13: #{net_forward.5} parent=1 // pred_fallthru
      _
    // Predicated region
    $region14: #{net_forward.5} parent=1 // pred_check
      _
    $region15: #{net_forward.5} parent=1 // pred_check_branch
      %20 = sbr.rel (0) target = $region17
    $region16: #{net_forward.5} parent=1 // pred_region
      _
    $region17: #{net_forward.5} parent=1 // pred_fallthru
      _
    // Predicated region
    $region18: #{net_forward.5} parent=1 // pred_check
      _
    $region19: #{net_forward.5} parent=1 // pred_check_branch
      %22 = sbr.rel (0) target = $region21
    $region20: #{net_forward.5} parent=1 // pred_region
      _
    $region21: #{net_forward.5} parent=1 // pred_fallthru
      _
    // Predicated region
    $region22: #{net_forward.5} parent=1 // pred_check
      _
    $region23: #{net_forward.5} parent=1 // pred_check_branch
      %24 = sbr.rel (0) target = $region25
    $region24: #{net_forward.5} parent=1 // pred_region
      _
    $region25: #{net_forward.5} parent=1 // pred_fallthru
      _
    // Predicated region
    $region26: #{net_forward.5} parent=1 // pred_check
      _
    $region27: #{net_forward.5} parent=1 // pred_check_branch
      %26 = sbr.rel (0) target = $region29
    $region28: #{net_forward.5} parent=1 // pred_region
      _
    $region29: #{net_forward.5} parent=1 // pred_fallthru
      _
    %v28 = vld [vmem:[%s0] sm:$0xf]
    %v29 = vld [vmem:[%s1] sm:$0xf]
    %v30 = vld [vmem:[%s1 + $0x4] sm:$0xf]
    %v31 = vld [vmem:[%s1 + $0x8] sm:$0xf]
    %v32 = vld [vmem:[%s1 + $0xc] sm:$0xf]
    %v33 = vld [vmem:[%s1 + $0x10] sm:$0xf]
    %v34 = vld [vmem:[%s1 + $0x14] sm:$0xf]
    %v35 = vld [vmem:[%s1 + $0x18] sm:$0xf]
    %v36 = vld [vmem:[%s1 + $0x1c] sm:$0xf]
    %v37 = vld [vmem:[%s1 + $0x20] sm:$0xf]
    %v38 = vld [vmem:[%s1 + $0x24] sm:$0xf]
    %v39 = vld [vmem:[%s1 + $0x28] sm:$0xf]
    %v40 = vld [vmem:[%s1 + $0x2c] sm:$0xf]
    %v41 = vld [vmem:[%s1 + $0x30] sm:$0xf]
    %v42 = vld [vmem:[%s1 + $0x34] sm:$0xf]
    %v43 = vld [vmem:[%s1 + $0x38] sm:$0xf]
    %v44 = vld [vmem:[%s1 + $0x3c] sm:$0xf]
    %v45 = vld [vmem:[%s1 + $0x40] sm:$0xf]
    %v46 = vld [vmem:[%s1 + $0x44] sm:$0xf]
    %v47 = vld [vmem:[%s1 + $0x48] sm:$0xf]
    %v48 = vld [vmem:[%s1 + $0x4c] sm:$0xf]
    %v49 = vld [vmem:[%s1 + $0x50] sm:$0xf]
    %v50 = vld [vmem:[%s1 + $0x54] sm:$0xf]
    %v51 = vld [vmem:[%s1 + $0x58] sm:$0xf]
    %v52 = vld [vmem:[%s1 + $0x5c] sm:$0xf]
    %v53 = vld [vmem:[%s1 + $0x60] sm:$0xf]
    %v54 = vld [vmem:[%s1 + $0x64] sm:$0xf]
    %v55 = vld [vmem:[%s1 + $0x68] sm:$0xf]
    %v56 = vld [vmem:[%s1 + $0x6c] sm:$0xf]
    %v57 = vld [vmem:[%s1 + $0x70] sm:$0xf]
    %v58 = vld [vmem:[%s1 + $0x74] sm:$0xf]
    %v59 = vld [vmem:[%s1 + $0x78] sm:$0xf]
    %v60 = vld [vmem:[%s1 + $0x7c] sm:$0xf]
    %v61 = vld [vmem:[%s1 + $0x80] sm:$0xf]
    %v62 = vld [vmem:[%s1 + $0x84] sm:$0xf]
    %v63 = vld [vmem:[%s1 + $0x88] sm:$0xf]
    %v64 = vld [vmem:[%s1 + $0x8c] sm:$0xf]
    %v65 = vld [vmem:[%s1 + $0x90] sm:$0xf]
    %v66 = vld [vmem:[%s1 + $0x94] sm:$0xf]
    %v67 = vld [vmem:[%s1 + $0x98] sm:$0xf]
    %v68 = vld [vmem:[%s1 + $0x9c] sm:$0xf]
    %v69 = vld [vmem:[%s1 + $0xa0] sm:$0xf]
    %v70 = vld [vmem:[%s1 + $0xa4] sm:$0xf]
    %v71 = vld [vmem:[%s1 + $0xa8] sm:$0xf]
    %v72 = vld [vmem:[%s1 + $0xac] sm:$0xf]
    %v73 = vld [vmem:[%s1 + $0xb0] sm:$0xf]
    %v74 = vld [vmem:[%s1 + $0xb4] sm:$0xf]
    %v75 = vld [vmem:[%s1 + $0xb8] sm:$0xf]
    %v76 = vld [vmem:[%s1 + $0xbc] sm:$0xf]
    %v77 = vld [vmem:[%s1 + $0xc0] sm:$0xf]
    %v78 = vld [vmem:[%s1 + $0xc4] sm:$0xf]
    %v79 = vld [vmem:[%s2] sm:$0x1]
    %v81 = vperm.slane %v79, 0
    %84 = vst [vmem:[#allocation1] ss:$9 sm:$0xff] %v28
    %v85 = vld [vmem:[#allocation1] sm:$0xff]
    %v86 = vld [vmem:[#allocation1 + $0x9] sm:$0xff]
    %v87 = vld [vmem:[#allocation1 + $0x12] sm:$0xff]
    %v88 = vld [vmem:[#allocation1 + $0x1b] sm:$0xff]
    %v142 = vunpack.c.l.b16 %v29
    %v143 = vunpack.c.l.b16 %v30
    %v144 = vunpack.c.l.b16 %v31
    %v145 = vunpack.c.l.b16 %v32
    %v146 = vunpack.c.l.b16 %v33
    %v147 = vunpack.c.l.b16 %v34
    %v148 = vunpack.c.l.b16 %v35
    %v149 = vunpack.c.l.b16 %v36
    %v150 = vunpack.c.l.b16 %v37
    %v151 = vunpack.c.l.b16 %v38
    %v152 = vunpack.c.l.b16 %v39
    %v153 = vunpack.c.l.b16 %v40
    %v154 = vunpack.c.l.b16 %v41
    %v155 = vunpack.c.l.b16 %v42
    %v156 = vunpack.c.l.b16 %v43
    %v157 = vunpack.c.l.b16 %v44
    %v158 = vunpack.c.l.b16 %v45
    %v159 = vunpack.c.l.b16 %v46
    %v160 = vunpack.c.l.b16 %v47
    %v161 = vunpack.c.l.b16 %v48
    %v162 = vunpack.c.l.b16 %v49
    %v163 = vunpack.c.l.b16 %v50
    %v164 = vunpack.c.l.b16 %v51
    %v165 = vunpack.c.l.b16 %v52
    %v166 = vunpack.c.l.b16 %v53
    %v167 = vunpack.c.l.b16 %v54
    %v168 = vunpack.c.l.b16 %v55
    %v169 = vunpack.c.l.b16 %v56
    %v170 = vunpack.c.l.b16 %v57
    %v171 = vunpack.c.l.b16 %v58
    %v172 = vunpack.c.l.b16 %v59
    %v173 = vunpack.c.l.b16 %v60
    %v174 = vunpack.c.l.b16 %v61
    %v175 = vunpack.c.l.b16 %v62
    %v176 = vunpack.c.l.b16 %v63
    %v177 = vunpack.c.l.b16 %v64
    %v178 = vunpack.c.l.b16 %v65
    %v179 = vunpack.c.l.b16 %v66
    %v180 = vunpack.c.l.b16 %v67
    %v181 = vunpack.c.l.b16 %v68
    %v182 = vunpack.c.l.b16 %v69
    %v183 = vunpack.c.l.b16 %v70
    %v184 = vunpack.c.l.b16 %v71
    %v185 = vunpack.c.l.b16 %v72
    %v186 = vunpack.c.l.b16 %v73
    %v187 = vunpack.c.l.b16 %v74
    %v188 = vunpack.c.l.b16 %v75
    %v189 = vunpack.c.l.b16 %v76
    %v190 = vunpack.c.l.b16 %v77
    %v191 = vunpack.c.l.b16 %v78
    %v192 = vpack.c.b16 %v143, %v142
    %v193 = vpack.c.b16 %v145, %v144
    %v194 = vpack.c.b16 %v147, %v146
    %v195 = vpack.c.b16 %v149, %v148
    %v196 = vpack.c.b16 %v151, %v150
    %v197 = vpack.c.b16 %v153, %v152
    %v198 = vpack.c.b16 %v155, %v154
    %v199 = vpack.c.b16 %v157, %v156
    %v200 = vpack.c.b16 %v159, %v158
    %v201 = vpack.c.b16 %v161, %v160
    %v202 = vpack.c.b16 %v163, %v162
    %v203 = vpack.c.b16 %v165, %v164
    %v204 = vpack.c.b16 %v167, %v166
    %v205 = vpack.c.b16 %v169, %v168
    %v206 = vpack.c.b16 %v171, %v170
    %v207 = vpack.c.b16 %v173, %v172
    %v208 = vpack.c.b16 %v175, %v174
    %v209 = vpack.c.b16 %v177, %v176
    %v210 = vpack.c.b16 %v179, %v178
    %v211 = vpack.c.b16 %v181, %v180
    %v212 = vpack.c.b16 %v183, %v182
    %v213 = vpack.c.b16 %v185, %v184
    %v214 = vpack.c.b16 %v187, %v186
    %v215 = vpack.c.b16 %v189, %v188
    %v216 = vpack.c.b16 %v191, %v190
    %vm242 = vcmask 130048
    %v243 = vsel %vm242, %v88, 0
    %245 = vmatpush.bf16.msra.mxu0 %v199
    %246 = vmatpush.bf16.msra.mxu0 %v198
    %247 = vmatpush.bf16.msra.mxu0 %v197
    %248 = vmatpush.bf16.msra.mxu0 %v196
    %249 = vmatpush.bf16.msra.mxu0 %v195
    %250 = vmatpush.bf16.msra.mxu0 %v194
    %251 = vmatpush.bf16.msra.mxu0 %v193
    %252 = vmatpush.bf16.msra.mxu0 %v192
    %253 = vmatmul.bf16.gmra.mxu0 %v85
    %v254 = vpop.f32.mrf.mxu0
    %v255 = vadd.f32 %v81, %v254
    %v256 = vpop.f32.mrf.mxu0
    %257 = vdwg.mxu0
    %258 = vmatpush.bf16.msra.mxu0 %v207
    %259 = vmatpush.bf16.msra.mxu0 %v206
    %260 = vmatpush.bf16.msra.mxu0 %v205
    %261 = vmatpush.bf16.msra.mxu0 %v204
    %262 = vmatpush.bf16.msra.mxu0 %v203
    %263 = vmatpush.bf16.msra.mxu0 %v202
    %264 = vmatpush.bf16.msra.mxu0 %v201
    %265 = vmatpush.bf16.msra.mxu0 %v200
    %266 = vmatmul.bf16.gmra.mxu0 %v86
    %v267 = vpop.f32.mrf.mxu0
    %v268 = vadd.f32 %v255, %v267
    %v269 = vpop.f32.mrf.mxu0
    %270 = vdwg.mxu0
    %271 = vmatpush.bf16.msra.mxu0 %v215
    %272 = vmatpush.bf16.msra.mxu0 %v214
    %273 = vmatpush.bf16.msra.mxu0 %v213
    %274 = vmatpush.bf16.msra.mxu0 %v212
    %275 = vmatpush.bf16.msra.mxu0 %v211
    %276 = vmatpush.bf16.msra.mxu0 %v210
    %277 = vmatpush.bf16.msra.mxu0 %v209
    %278 = vmatpush.bf16.msra.mxu0 %v208
    %279 = vmatmul.bf16.gmra.mxu0 %v87
    %v280 = vpop.f32.mrf.mxu0
    %v281 = vadd.f32 %v268, %v280
    %v282 = vpop.f32.mrf.mxu0
    %283 = vdwg.mxu0
    %284 = vmatpush.bf16.msra.mxu0 0
    %285 = vmatpush.bf16.msra.mxu0 0
    %286 = vmatpush.bf16.msra.mxu0 0
    %287 = vmatpush.bf16.msra.mxu0 0
    %288 = vmatpush.bf16.msra.mxu0 0
    %289 = vmatpush.bf16.msra.mxu0 0
    %290 = vmatpush.bf16.msra.mxu0 0
    %291 = vmatpush.bf16.msra.mxu0 %v216
    %292 = vmatmul.bf16.gmra.mxu0 %v243
    %v293 = vpop.f32.mrf.mxu0
    %v294 = vadd.f32 %v281, %v293
    %v295 = vpop.f32.mrf.mxu0
    %296 = vdwg.mxu0
    %v297 = vmax.f32 %v294, 0.0
    %v298 = vpack.c.bf16 %v297, %v297
    %v299 = vld [vmem:[%s3] sm:$0xf]
    %v300 = vld [vmem:[%s3 + $0x4] sm:$0xf]
    %v301 = vld [vmem:[%s3 + $0x8] sm:$0xf]
    %v302 = vld [vmem:[%s3 + $0xc] sm:$0xf]
    %v303 = vld [vmem:[%s3 + $0x10] sm:$0xf]
    %v304 = vld [vmem:[%s3 + $0x14] sm:$0xf]
    %v305 = vld [vmem:[%s3 + $0x18] sm:$0xf]
    %v306 = vld [vmem:[%s3 + $0x1c] sm:$0xf]
    %v307 = vld [vmem:[%s3 + $0x20] sm:$0xf]
    %v308 = vld [vmem:[%s3 + $0x24] sm:$0xf]
    %v309 = vld [vmem:[%s3 + $0x28] sm:$0xf]
    %v310 = vld [vmem:[%s3 + $0x2c] sm:$0xf]
    %v311 = vld [vmem:[%s3 + $0x30] sm:$0xf]
    %v312 = vld [vmem:[%s3 + $0x34] sm:$0xf]
    %v313 = vld [vmem:[%s3 + $0x38] sm:$0xf]
    %v314 = vld [vmem:[%s3 + $0x3c] sm:$0xf]
    %v315 = vld [vmem:[%s4] sm:$0x1]
    %v317 = vperm.slane %v315, 0
    %v335 = vunpack.c.l.b16 %v299
    %v336 = vunpack.c.l.b16 %v300
    %v337 = vunpack.c.l.b16 %v301
    %v338 = vunpack.c.l.b16 %v302
    %v339 = vunpack.c.l.b16 %v303
    %v340 = vunpack.c.l.b16 %v304
    %v341 = vunpack.c.l.b16 %v305
    %v342 = vunpack.c.l.b16 %v306
    %v343 = vunpack.c.l.b16 %v307
    %v344 = vunpack.c.l.b16 %v308
    %v345 = vunpack.c.l.b16 %v309
    %v346 = vunpack.c.l.b16 %v310
    %v347 = vunpack.c.l.b16 %v311
    %v348 = vunpack.c.l.b16 %v312
    %v349 = vunpack.c.l.b16 %v313
    %v350 = vunpack.c.l.b16 %v314
    %v351 = vpack.c.b16 %v336, %v335
    %v352 = vpack.c.b16 %v338, %v337
    %v353 = vpack.c.b16 %v340, %v339
    %v354 = vpack.c.b16 %v342, %v341
    %v355 = vpack.c.b16 %v344, %v343
    %v356 = vpack.c.b16 %v346, %v345
    %v357 = vpack.c.b16 %v348, %v347
    %v358 = vpack.c.b16 %v350, %v349
    %367 = vmatpush.bf16.msra.mxu0 %v358
    %368 = vmatpush.bf16.msra.mxu0 %v357
    %369 = vmatpush.bf16.msra.mxu0 %v356
    %370 = vmatpush.bf16.msra.mxu0 %v355
    %371 = vmatpush.bf16.msra.mxu0 %v354
    %372 = vmatpush.bf16.msra.mxu0 %v353
    %373 = vmatpush.bf16.msra.mxu0 %v352
    %374 = vmatpush.bf16.msra.mxu0 %v351
    %375 = vmatmul.bf16.gmra.mxu0 %v298
    %v376 = vpop.f32.mrf.mxu0
    %v377 = vadd.f32 %v317, %v376
    %v378 = vpop.f32.mrf.mxu0
    %379 = vdwg.mxu0
    %v380 = vmax.f32 %v377, 0.0
    %v381 = vpack.c.bf16 %v380, %v380
    %v382 = vld [vmem:[%s5] sm:$0xf]
    %v383 = vld [vmem:[%s5 + $0x4] sm:$0xf]
    %v384 = vld [vmem:[%s5 + $0x8] sm:$0xf]
    %v385 = vld [vmem:[%s5 + $0xc] sm:$0xf]
    %v386 = vld [vmem:[%s5 + $0x10] sm:$0xf]
    %v387 = vld [vmem:[%s5 + $0x14] sm:$0xf]
    %v388 = vld [vmem:[%s5 + $0x18] sm:$0xf]
    %v389 = vld [vmem:[%s5 + $0x1c] sm:$0xf]
    %v390 = vld [vmem:[%s5 + $0x20] sm:$0xf]
    %v391 = vld [vmem:[%s5 + $0x24] sm:$0xf]
    %v392 = vld [vmem:[%s5 + $0x28] sm:$0xf]
    %v393 = vld [vmem:[%s5 + $0x2c] sm:$0xf]
    %v394 = vld [vmem:[%s5 + $0x30] sm:$0xf]
    %v395 = vld [vmem:[%s5 + $0x34] sm:$0xf]
    %v396 = vld [vmem:[%s5 + $0x38] sm:$0xf]
    %v397 = vld [vmem:[%s5 + $0x3c] sm:$0xf]
    %v398 = vld [vmem:[%s6] sm:$0x1]
    %v400 = vperm.slane %v398, 0
    %v418 = vunpack.c.l.b16 %v382
    %v419 = vunpack.c.l.b16 %v383
    %v420 = vunpack.c.l.b16 %v384
    %v421 = vunpack.c.l.b16 %v385
    %v422 = vunpack.c.l.b16 %v386
    %v423 = vunpack.c.l.b16 %v387
    %v424 = vunpack.c.l.b16 %v388
    %v425 = vunpack.c.l.b16 %v389
    %v426 = vunpack.c.l.b16 %v390
    %v427 = vunpack.c.l.b16 %v391
    %v428 = vunpack.c.l.b16 %v392
    %v429 = vunpack.c.l.b16 %v393
    %v430 = vunpack.c.l.b16 %v394
    %v431 = vunpack.c.l.b16 %v395
    %v432 = vunpack.c.l.b16 %v396
    %v433 = vunpack.c.l.b16 %v397
    %v434 = vpack.c.b16 %v419, %v418
    %v435 = vpack.c.b16 %v421, %v420
    %v436 = vpack.c.b16 %v423, %v422
    %v437 = vpack.c.b16 %v425, %v424
    %v438 = vpack.c.b16 %v427, %v426
    %v439 = vpack.c.b16 %v429, %v428
    %v440 = vpack.c.b16 %v431, %v430
    %v441 = vpack.c.b16 %v433, %v432
    %450 = vmatpush.bf16.msra.mxu0 %v441
    %451 = vmatpush.bf16.msra.mxu0 %v440
    %452 = vmatpush.bf16.msra.mxu0 %v439
    %453 = vmatpush.bf16.msra.mxu0 %v438
    %454 = vmatpush.bf16.msra.mxu0 %v437
    %455 = vmatpush.bf16.msra.mxu0 %v436
    %456 = vmatpush.bf16.msra.mxu0 %v435
    %457 = vmatpush.bf16.msra.mxu0 %v434
    %458 = vmatmul.bf16.gmra.mxu0 %v381
    %v459 = vpop.f32.mrf.mxu0
    %v460 = vadd.f32 %v400, %v459
    %v461 = vpop.f32.mrf.mxu0
    %462 = vdwg.mxu0
    %463 = vst [vmem:[#allocation2] sm:$0x3] %v460
    // Predicated region
    $region30: #{net_forward.5} parent=1 // pred_check
      _
    $region31: #{net_forward.5} parent=1 // pred_check_branch
      %465 = sbr.rel (0) target = $region33
    $region32: #{net_forward.5} parent=1 // pred_region
      %467 = vsyncadd [#allocation3], 0
      %s469 = sshll.u32 [#allocation2], 4
      %s470 = int_to_ptr.vmem [resolvable:$true] %s469
      %s471 = sshll.u32 %s7, 4
      %s472 = int_to_ptr.hbm [resolvable:$true] %s471
      %474 = dma.vmem_to_hbm [thread:$0]  %s470, 32, %s472, [#allocation3]
    $region33: #{net_forward.5} parent=1 // pred_fallthru
      _
    // Predicated region
    $region34: #{net_forward.5} parent=1 // pred_check
      _
    $region35: #{net_forward.5} parent=1 // pred_check_branch
      %476 = sbr.rel (0) target = $region37
    $region36: #{net_forward.5} parent=1 // pred_region
      %478 = dma.done [#allocation3], 32
    $region37: #{net_forward.5} parent=1 // pred_fallthru
      _
    %479 = vsyncpa [#allocation3], 1

</llo_original>
